<compile_context>
chip_gen: v7x
topology: tpu7x:2x2x1
jax: 0.10.0
libtpu: 0.0.40
codegen_flags: <defaults>
</compile_context>

<pallas_src>
import functools

import jax
import jax.numpy as jnp
from jax.experimental import pallas as pl
from jax.experimental.pallas import tpu as pltpu

LANE = 128      # TPU lane width
SUBLANE = 8     # TPU sublane width


def _round_up(n, m):
    return ((n + m - 1) // m) * m


def _num_tensorcores():
    # v7x has 2 TensorCores per chip; v5e/v6e have 1.  Safe fallback: 1.
    try:
        kind = jax.devices()[0].device_kind.lower()
    except Exception:
        return 1
    return 2 if "v7" in kind else 1


def _pick_batch_tile(batch, block_b):
    if block_b is None:
        # One tile per TensorCore (grid=1 on v5e/v6e, grid=2 on v7x), capped at 2048 rows.
        # This kernel is per-step-overhead bound, not VMEM bound, so fewer/larger tiles win
        # on single-core chips; on v7x one tile per core keeps both cores busy.
        block_b = _round_up(-(-batch // _num_tensorcores()), LANE)
        block_b = min(block_b, 2048)
    # The output's lane axis is the batch dim -> tile must be a multiple of 128.
    tb = min(_round_up(block_b, LANE), _round_up(batch, LANE))
    return max(tb, LANE)


def critic_mlp_kernel(x_ref, w1_ref, b1_ref, w2_ref, b2_ref, w3t_ref, b3t_ref, ot_ref):
    # One batch tile per grid step; weights/biases are VMEM-resident (block (0, 0)).
    cd = w1_ref.dtype  # MXU input dtype (f32 or bf16); accumulation is always f32.
    x = x_ref[...].astype(cd)                                              # (TB, D)
    h1 = jnp.dot(x, w1_ref[...], preferred_element_type=jnp.float32)      # (TB, H) f32
    h1 = jnp.maximum(h1 + b1_ref[...], 0.0)                               # bias+ReLU in f32
    h2 = jnp.dot(h1.astype(cd), w2_ref[...], preferred_element_type=jnp.float32)
    h2 = jnp.maximum(h2 + b2_ref[...], 0.0)                               # (TB, H) f32
    # Transposed critic head: (NOUT8, H) contracted with (TB, H) on H -> (NOUT8, TB).
    # This makes the batch dim the lane axis of the stored block (lane-dense, de-padded).
    out_t = jax.lax.dot_general(
        w3t_ref[...], h2.astype(cd),
        dimension_numbers=(((1,), (1,)), ((), ())),
        preferred_element_type=jnp.float32)
    ot_ref[...] = (out_t + b3t_ref[...]).astype(ot_ref.dtype)             # (NOUT8, TB)


@functools.partial(jax.jit, static_argnames=("n_out", "block_b"))
def critic_forward(x, w1, b1, w2, b2, w3t, b3t, *, n_out, block_b=None):
    """x: (B, space_dim).  w3t/b3t are the sublane-padded transposed head (NOUT8, H)/(NOUT8, 1)."""
    B, D = x.shape
    NOUT8 = w3t.shape[0]

    tb = _pick_batch_tile(B, block_b)
    Bp = _round_up(B, tb)
    if Bp != B:
        # Dormant fallback (extra HBM pass over x); the auto tile picker divides B for
        # typical batch sizes so this branch is normally skipped.
        x = jnp.pad(x, ((0, Bp - B), (0, 0)))

    resident = lambda shape: pl.BlockSpec(shape, lambda i: (0, 0))  # fetched once, stays in VMEM

    out_t = pl.pallas_call(
        critic_mlp_kernel,
        out_shape=jax.ShapeDtypeStruct((NOUT8, Bp), jnp.float32),
        grid=(Bp // tb,),
        in_specs=[
            pl.BlockSpec((tb, D), lambda i: (i, 0)),   # x: streamed per batch tile
            resident(w1.shape),
            resident(b1.shape),
            resident(w2.shape),
            resident(b2.shape),
            resident(w3t.shape),
            resident(b3t.shape),
        ],
        out_specs=pl.BlockSpec((NOUT8, tb), lambda i: (0, i)),  # lane-dense over batch
        compiler_params=pltpu.CompilerParams(
            dimension_semantics=("parallel",),  # shards tiles across v7x's 2 TCs; no-op on 1-TC chips
        ),
    )(x, w1, b1, w2, b2, w3t, b3t)

    # (n_out, B) -> (B, n_out).  Tiny (<= 8*B*4 bytes) readback instead of a 128-wide slab.
    return out_t[:n_out, :B].T


def prepare_params(params, *, weight_dtype=jnp.bfloat16):
    """Build kernel params: transpose+sublane-pad the head, cast weights to weight_dtype.

    `params` weights are (in, out); if importing a torch state_dict, transpose once here.
    Biases stay f32 (added to the f32 accumulator inside the kernel).
    """
    w1, b1, w2, b2, w3, b3 = params
    n_out = w3.shape[1]
    nout8 = _round_up(n_out, SUBLANE)
    w3t = jnp.pad(w3.T, ((0, nout8 - n_out), (0, 0)))   # (NOUT8, H), zero pad rows
    b3t = jnp.pad(b3.T, ((0, nout8 - n_out), (0, 0)))   # (NOUT8, 1)
    f32 = jnp.float32
    kparams = (w1.astype(weight_dtype), b1.astype(f32),
               w2.astype(weight_dtype), b2.astype(f32),
               w3t.astype(weight_dtype), b3t.astype(f32))
    return kparams, n_out


def init_params(key, space_dim, hidden_dim=256, critic_value=1):
    """PyTorch-default-like Linear init (uniform +/- 1/sqrt(fan_in)), (in, out) layout."""
    ks = jax.random.split(key, 6)

    def linear(kw, kb, fan_in, fan_out):
        bound = 1.0 / jnp.sqrt(float(fan_in))
        w = jax.random.uniform(kw, (fan_in, fan_out), jnp.float32, -bound, bound)
        b = jax.random.uniform(kb, (1, fan_out), jnp.float32, -bound, bound)
        return w, b

    w1, b1 = linear(ks[0], ks[1], space_dim, hidden_dim)
    w2, b2 = linear(ks[2], ks[3], hidden_dim, hidden_dim)
    w3, b3 = linear(ks[4], ks[5], hidden_dim, critic_value)
    return (w1, b1, w2, b2, w3, b3)


if __name__ == "__main__":
    # Module defaults: HIDDEN_DIM=256, critic_value=1.
    batch, space_dim, hidden_dim, critic_value = 1024, 16, 256, 1

    key = jax.random.PRNGKey(0)
    k_x, k_p = jax.random.split(key)
    x = jax.random.normal(k_x, (batch, space_dim), jnp.float32)
    raw_params = init_params(k_p, space_dim, hidden_dim, critic_value)

    # Pure-JAX reference (full-precision matmuls) = the PyTorch forward.
    w1, b1, w2, b2, w3, b3 = raw_params
    dot = functools.partial(jax.lax.dot, precision=jax.lax.Precision.HIGHEST,
                            preferred_element_type=jnp.float32)
    ref = jnp.maximum(dot(x, w1) + b1, 0.0)
    ref = jnp.maximum(dot(ref, w2) + b2, 0.0)
    ref = dot(ref, w3) + b3

    # f32 path: semantics of the PyTorch module (up to default MXU f32 matmul precision).
    kp_f32, n_out = prepare_params(raw_params, weight_dtype=jnp.float32)
    out = jax.block_until_ready(critic_forward(x, *kp_f32, n_out=n_out))
    assert out.shape == (batch, critic_value)
    assert jnp.allclose(out, ref, atol=2e-3, rtol=2e-3), float(jnp.max(jnp.abs(out - ref)))

    # Same params, forced multi-tile grid: exercises the batch-tiled pipeline even on
    # single-TensorCore chips (where the auto tile picker would choose grid=1).
    out_tiled = jax.block_until_ready(critic_forward(x, *kp_f32, n_out=n_out, block_b=256))
    assert out_tiled.shape == (batch, critic_value)
    assert jnp.allclose(out_tiled, ref, atol=2e-3, rtol=2e-3)

    # Default fast path: bf16 weights + bf16 activations, f32 accumulation/epilogue.
    kp_bf16, _ = prepare_params(raw_params)  # weight_dtype defaults to bf16
    out_bf16 = jax.block_until_ready(
        critic_forward(x.astype(jnp.bfloat16), *kp_bf16, n_out=n_out))
    assert out_bf16.shape == (batch, critic_value)
    assert jnp.allclose(out_bf16, ref, atol=7.5e-2, rtol=7.5e-2), \
        float(jnp.max(jnp.abs(out_bf16 - ref)))

    # TODO(synk): save_dict/load_dict (torch checkpoint file I/O) have no kernel
    # equivalent and are intentionally omitted.
    print("KERNEL_OK")
</pallas_src>

<mosaic_0001>
module attributes {stable_mosaic.version = 11 : i64} {
  func.func @critic_mlp_kernel(%arg0: i32, %arg1: memref<1024x16xf32, #tpu.memory_space<vmem>>, %arg2: memref<16x256xf32, #tpu.memory_space<vmem>>, %arg3: memref<1x256xf32, #tpu.memory_space<vmem>>, %arg4: memref<256x256xf32, #tpu.memory_space<vmem>>, %arg5: memref<1x256xf32, #tpu.memory_space<vmem>>, %arg6: memref<8x256xf32, #tpu.memory_space<vmem>>, %arg7: memref<8x1xf32, #tpu.memory_space<vmem>>, %arg8: memref<8x1024xf32, #tpu.memory_space<vmem>>) attributes {dimension_semantics = [#tpu.dimension_semantics<parallel>], iteration_bounds = array<i64: 1>, scalar_prefetch = 0 : i64, scratch_operands = 0 : i64, tpu.core_type = #tpu.core_type<tc>, window_params = [{transform_indices = @transform_0, window_bounds = array<i64: 1024, 16>}, {pipeline_mode = #tpu.pipeline_mode<synchronous>, transform_indices = @transform_1, window_bounds = array<i64: 16, 256>}, {pipeline_mode = #tpu.pipeline_mode<synchronous>, transform_indices = @transform_2, window_bounds = array<i64: 1, 256>}, {pipeline_mode = #tpu.pipeline_mode<synchronous>, transform_indices = @transform_3, window_bounds = array<i64: 256, 256>}, {pipeline_mode = #tpu.pipeline_mode<synchronous>, transform_indices = @transform_4, window_bounds = array<i64: 1, 256>}, {pipeline_mode = #tpu.pipeline_mode<synchronous>, transform_indices = @transform_5, window_bounds = array<i64: 8, 256>}, {pipeline_mode = #tpu.pipeline_mode<synchronous>, transform_indices = @transform_6, window_bounds = array<i64: 8, 1>}, {transform_indices = @transform_7, window_bounds = array<i64: 8, 1024>}]} {
    %c0 = arith.constant 0 : index
    %c0_0 = arith.constant 0 : index
    %0 = vector.load %arg1[%c0, %c0_0] : memref<1024x16xf32, #tpu.memory_space<vmem>>, vector<1024x16xf32>
    %c0_1 = arith.constant 0 : index
    %c0_2 = arith.constant 0 : index
    %1 = vector.load %arg2[%c0_1, %c0_2] : memref<16x256xf32, #tpu.memory_space<vmem>>, vector<16x256xf32>
    %cst = arith.constant dense<0.000000e+00> : vector<1024x256xf32>
    %2 = tpu.matmul %0, %1, %cst {dimension_numbers = #tpu.dot_dimension_numbers<[1], [0], [0], [1], [0, 0, 1, 1], [], []>} : vector<1024x16xf32>, vector<16x256xf32>, vector<1024x256xf32> -> vector<1024x256xf32>
    %c0_3 = arith.constant 0 : index
    %c0_4 = arith.constant 0 : index
    %3 = vector.load %arg3[%c0_3, %c0_4] : memref<1x256xf32, #tpu.memory_space<vmem>>, vector<1x256xf32>
    %4 = vector.broadcast %3 : vector<1x256xf32> to vector<1024x256xf32>
    %5 = arith.addf %2, %4 : vector<1024x256xf32>
    %cst_5 = arith.constant 0.000000e+00 : f32
    %6 = vector.broadcast %cst_5 : f32 to vector<1024x256xf32>
    %7 = arith.maximumf %5, %6 : vector<1024x256xf32>
    %c0_6 = arith.constant 0 : index
    %c0_7 = arith.constant 0 : index
    %8 = vector.load %arg4[%c0_6, %c0_7] : memref<256x256xf32, #tpu.memory_space<vmem>>, vector<256x256xf32>
    %cst_8 = arith.constant dense<0.000000e+00> : vector<1024x256xf32>
    %9 = tpu.matmul %7, %8, %cst_8 {dimension_numbers = #tpu.dot_dimension_numbers<[1], [0], [0], [1], [0, 0, 1, 1], [], []>} : vector<1024x256xf32>, vector<256x256xf32>, vector<1024x256xf32> -> vector<1024x256xf32>
    %c0_9 = arith.constant 0 : index
    %c0_10 = arith.constant 0 : index
    %10 = vector.load %arg5[%c0_9, %c0_10] : memref<1x256xf32, #tpu.memory_space<vmem>>, vector<1x256xf32>
    %11 = vector.broadcast %10 : vector<1x256xf32> to vector<1024x256xf32>
    %12 = arith.addf %9, %11 : vector<1024x256xf32>
    %cst_11 = arith.constant 0.000000e+00 : f32
    %13 = vector.broadcast %cst_11 : f32 to vector<1024x256xf32>
    %14 = arith.maximumf %12, %13 : vector<1024x256xf32>
    %c0_12 = arith.constant 0 : index
    %c0_13 = arith.constant 0 : index
    %15 = vector.load %arg6[%c0_12, %c0_13] : memref<8x256xf32, #tpu.memory_space<vmem>>, vector<8x256xf32>
    %cst_14 = arith.constant dense<0.000000e+00> : vector<8x1024xf32>
    %16 = tpu.matmul %15, %14, %cst_14 {dimension_numbers = #tpu.dot_dimension_numbers<[1], [1], [0], [0], [0, 0, 1, 0], [], []>} : vector<8x256xf32>, vector<1024x256xf32>, vector<8x1024xf32> -> vector<8x1024xf32>
    %c0_15 = arith.constant 0 : index
    %c0_16 = arith.constant 0 : index
    %17 = vector.load %arg7[%c0_15, %c0_16] : memref<8x1xf32, #tpu.memory_space<vmem>>, vector<8x1xf32>
    %18 = vector.broadcast %17 : vector<8x1xf32> to vector<8x1024xf32>
    %19 = arith.addf %16, %18 : vector<8x1024xf32>
    %c0_17 = arith.constant 0 : index
    %c0_18 = arith.constant 0 : index
    %20 = vector.load %arg8[%c0_17, %c0_18] : memref<8x1024xf32, #tpu.memory_space<vmem>>, vector<8x1024xf32>
    tpu.vector_store %arg8[%c0_17, %c0_18], %19 {strides = array<i32>} : memref<8x1024xf32, #tpu.memory_space<vmem>>, vector<8x1024xf32>,
    return
  }
  func.func @transform_0(%arg0: i32) -> (i32, i32) {
    %c0_i32 = arith.constant 0 : i32
    %c0_i32_0 = arith.constant 0 : i32
    return %arg0, %c0_i32 : i32, i32
  }
  func.func @transform_1(%arg0: i32) -> (i32, i32) {
    %c0_i32 = arith.constant 0 : i32
    %c0_i32_0 = arith.constant 0 : i32
    %c0_i32_1 = arith.constant 0 : i32
    return %c0_i32, %c0_i32_0 : i32, i32
  }
  func.func @transform_2(%arg0: i32) -> (i32, i32) {
    %c0_i32 = arith.constant 0 : i32
    %c0_i32_0 = arith.constant 0 : i32
    %c0_i32_1 = arith.constant 0 : i32
    return %c0_i32, %c0_i32_0 : i32, i32
  }
  func.func @transform_3(%arg0: i32) -> (i32, i32) {
    %c0_i32 = arith.constant 0 : i32
    %c0_i32_0 = arith.constant 0 : i32
    %c0_i32_1 = arith.constant 0 : i32
    return %c0_i32, %c0_i32_0 : i32, i32
  }
  func.func @transform_4(%arg0: i32) -> (i32, i32) {
    %c0_i32 = arith.constant 0 : i32
    %c0_i32_0 = arith.constant 0 : i32
    %c0_i32_1 = arith.constant 0 : i32
    return %c0_i32, %c0_i32_0 : i32, i32
  }
  func.func @transform_5(%arg0: i32) -> (i32, i32) {
    %c0_i32 = arith.constant 0 : i32
    %c0_i32_0 = arith.constant 0 : i32
    %c0_i32_1 = arith.constant 0 : i32
    return %c0_i32, %c0_i32_0 : i32, i32
  }
  func.func @transform_6(%arg0: i32) -> (i32, i32) {
    %c0_i32 = arith.constant 0 : i32
    %c0_i32_0 = arith.constant 0 : i32
    %c0_i32_1 = arith.constant 0 : i32
    return %c0_i32, %c0_i32_0 : i32, i32
  }
  func.func @transform_7(%arg0: i32) -> (i32, i32) {
    %c0_i32 = arith.constant 0 : i32
    %c0_i32_0 = arith.constant 0 : i32
    return %c0_i32, %arg0 : i32, i32
  }
}

</mosaic_0001>

<llo_original>
// kernel: critic_forward.1
$region0: #{critic_forward.1}
  #allocation0 [shape = 'u32[]', space=smem, size = 0x4, offset = 0x4, fixed_abs, tag = 'smem constant byte address 0x4 - core index']
  #allocation1 [shape = 'u32[144,128]{1,0:T(1,128)}', space=vmem, size = 0x12000, scoped, tag = 'internal scratch']
  %s0 = inlined_call_operand.vmem [shape: f32[1024,16], index: 0, kind: input, shape index: {}]
  %s1 = inlined_call_operand.vmem [shape: f32[16,256], index: 1, kind: input, shape index: {}]
  %s2 = inlined_call_operand.vmem [shape: f32[1,256], index: 2, kind: input, shape index: {}]
  %s3 = inlined_call_operand.vmem [shape: f32[256,256], index: 3, kind: input, shape index: {}]
  %s4 = inlined_call_operand.vmem [shape: f32[1,256], index: 4, kind: input, shape index: {}]
  %s5 = inlined_call_operand.vmem [shape: f32[8,256], index: 5, kind: input, shape index: {}]
  %s6 = inlined_call_operand.vmem [shape: f32[8,1], index: 6, kind: input, shape index: {}]
  %s7 = inlined_call_operand.vmem [shape: f32[8,1024], index: 7, kind: output, shape index: {}]
  %s8 = sld [smem:[#allocation0]]
  $region38: #{critic_forward.1} parent=0
    _
  %s10 = ssub.s32 1, %s8
  %s11 = scalar_select 0, %s10, %s8
  // Predicated region
  $region2: #{critic_forward.1} parent=0 // pred_check
    _
  $region3: #{critic_forward.1} parent=0 // pred_check_branch
    %13 = sbr.rel (0) target = $region5
  $region4: #{critic_forward.1} parent=0 // pred_region
    _
  $region5: #{critic_forward.1} parent=0 // pred_fallthru
    _
  // Predicated region
  $region6: #{critic_forward.1} parent=0 // pred_check
    _
  $region7: #{critic_forward.1} parent=0 // pred_check_branch
    %15 = sbr.rel (0) target = $region9
  $region8: #{critic_forward.1} parent=0 // pred_region
    _
  $region9: #{critic_forward.1} parent=0 // pred_fallthru
    _
  // Predicated region
  $region10: #{critic_forward.1} parent=0 // pred_check
    _
  $region11: #{critic_forward.1} parent=0 // pred_check_branch
    %17 = sbr.rel (0) target = $region13
  $region12: #{critic_forward.1} parent=0 // pred_region
    _
  $region13: #{critic_forward.1} parent=0 // pred_fallthru
    _
  // Predicated region
  $region14: #{critic_forward.1} parent=0 // pred_check
    _
  $region15: #{critic_forward.1} parent=0 // pred_check_branch
    %19 = sbr.rel (0) target = $region17
  $region16: #{critic_forward.1} parent=0 // pred_region
    _
  $region17: #{critic_forward.1} parent=0 // pred_fallthru
    _
  // Predicated region
  $region18: #{critic_forward.1} parent=0 // pred_check
    _
  $region19: #{critic_forward.1} parent=0 // pred_check_branch
    %21 = sbr.rel (0) target = $region21
  $region20: #{critic_forward.1} parent=0 // pred_region
    _
  $region21: #{critic_forward.1} parent=0 // pred_fallthru
    _
  // Predicated region
  $region22: #{critic_forward.1} parent=0 // pred_check
    _
  $region23: #{critic_forward.1} parent=0 // pred_check_branch
    %23 = sbr.rel (0) target = $region25
  $region24: #{critic_forward.1} parent=0 // pred_region
    _
  $region25: #{critic_forward.1} parent=0 // pred_fallthru
    _
  // Predicated region
  $region26: #{critic_forward.1} parent=0 // pred_check
    _
  $region27: #{critic_forward.1} parent=0 // pred_check_branch
    %25 = sbr.rel (0) target = $region29
  $region28: #{critic_forward.1} parent=0 // pred_region
    _
  $region29: #{critic_forward.1} parent=0 // pred_fallthru
    _
  %v26 = vld [vmem:[%s0] sm:$0xff]
  %v27 = vld [vmem:[%s0 + $0x8] sm:$0xff]
  %v28 = vld [vmem:[%s0 + $0x10] sm:$0xff]
  %v29 = vld [vmem:[%s0 + $0x18] sm:$0xff]
  %v30 = vld [vmem:[%s0 + $0x20] sm:$0xff]
  %v31 = vld [vmem:[%s0 + $0x28] sm:$0xff]
  %v32 = vld [vmem:[%s0 + $0x30] sm:$0xff]
  %v33 = vld [vmem:[%s0 + $0x38] sm:$0xff]
  %v34 = vld [vmem:[%s0 + $0x40] sm:$0xff]
  %v35 = vld [vmem:[%s0 + $0x48] sm:$0xff]
  %v36 = vld [vmem:[%s0 + $0x50] sm:$0xff]
  %v37 = vld [vmem:[%s0 + $0x58] sm:$0xff]
  %v38 = vld [vmem:[%s0 + $0x60] sm:$0xff]
  %v39 = vld [vmem:[%s0 + $0x68] sm:$0xff]
  %v40 = vld [vmem:[%s0 + $0x70] sm:$0xff]
  %v41 = vld [vmem:[%s0 + $0x78] sm:$0xff]
  %v42 = vld [vmem:[%s0 + $0x80] sm:$0xff]
  %v43 = vld [vmem:[%s0 + $0x88] sm:$0xff]
  %v44 = vld [vmem:[%s0 + $0x90] sm:$0xff]
  %v45 = vld [vmem:[%s0 + $0x98] sm:$0xff]
  %v46 = vld [vmem:[%s0 + $0xa0] sm:$0xff]
  %v47 = vld [vmem:[%s0 + $0xa8] sm:$0xff]
  %v48 = vld [vmem:[%s0 + $0xb0] sm:$0xff]
  %v49 = vld [vmem:[%s0 + $0xb8] sm:$0xff]
  %v50 = vld [vmem:[%s0 + $0xc0] sm:$0xff]
  %v51 = vld [vmem:[%s0 + $0xc8] sm:$0xff]
  %v52 = vld [vmem:[%s0 + $0xd0] sm:$0xff]
  %v53 = vld [vmem:[%s0 + $0xd8] sm:$0xff]
  %v54 = vld [vmem:[%s0 + $0xe0] sm:$0xff]
  %v55 = vld [vmem:[%s0 + $0xe8] sm:$0xff]
  %v56 = vld [vmem:[%s0 + $0xf0] sm:$0xff]
  %v57 = vld [vmem:[%s0 + $0xf8] sm:$0xff]
  %v58 = vld [vmem:[%s0 + $0x100] sm:$0xff]
  %v59 = vld [vmem:[%s0 + $0x108] sm:$0xff]
  %v60 = vld [vmem:[%s0 + $0x110] sm:$0xff]
  %v61 = vld [vmem:[%s0 + $0x118] sm:$0xff]
  %v62 = vld [vmem:[%s0 + $0x120] sm:$0xff]
  %v63 = vld [vmem:[%s0 + $0x128] sm:$0xff]
  %v64 = vld [vmem:[%s0 + $0x130] sm:$0xff]
  %v65 = vld [vmem:[%s0 + $0x138] sm:$0xff]
  %v66 = vld [vmem:[%s0 + $0x140] sm:$0xff]
  %v67 = vld [vmem:[%s0 + $0x148] sm:$0xff]
  %v68 = vld [vmem:[%s0 + $0x150] sm:$0xff]
  %v69 = vld [vmem:[%s0 + $0x158] sm:$0xff]
  %v70 = vld [vmem:[%s0 + $0x160] sm:$0xff]
  %v71 = vld [vmem:[%s0 + $0x168] sm:$0xff]
  %v72 = vld [vmem:[%s0 + $0x170] sm:$0xff]
  %v73 = vld [vmem:[%s0 + $0x178] sm:$0xff]
  %v74 = vld [vmem:[%s0 + $0x180] sm:$0xff]
  %v75 = vld [vmem:[%s0 + $0x188] sm:$0xff]
  %v76 = vld [vmem:[%s0 + $0x190] sm:$0xff]
  %v77 = vld [vmem:[%s0 + $0x198] sm:$0xff]
  %v78 = vld [vmem:[%s0 + $0x1a0] sm:$0xff]
  %v79 = vld [vmem:[%s0 + $0x1a8] sm:$0xff]
  %v80 = vld [vmem:[%s0 + $0x1b0] sm:$0xff]
  %v81 = vld [vmem:[%s0 + $0x1b8] sm:$0xff]
  %v82 = vld [vmem:[%s0 + $0x1c0] sm:$0xff]
  %v83 = vld [vmem:[%s0 + $0x1c8] sm:$0xff]
  %v84 = vld [vmem:[%s0 + $0x1d0] sm:$0xff]
  %v85 = vld [vmem:[%s0 + $0x1d8] sm:$0xff]
  %v86 = vld [vmem:[%s0 + $0x1e0] sm:$0xff]
  %v87 = vld [vmem:[%s0 + $0x1e8] sm:$0xff]
  %v88 = vld [vmem:[%s0 + $0x1f0] sm:$0xff]
  %v89 = vld [vmem:[%s0 + $0x1f8] sm:$0xff]
  %v90 = vld [vmem:[%s0 + $0x200] sm:$0xff]
  %v91 = vld [vmem:[%s0 + $0x208] sm:$0xff]
  %v92 = vld [vmem:[%s0 + $0x210] sm:$0xff]
  %v93 = vld [vmem:[%s0 + $0x218] sm:$0xff]
  %v94 = vld [vmem:[%s0 + $0x220] sm:$0xff]
  %v95 = vld [vmem:[%s0 + $0x228] sm:$0xff]
  %v96 = vld [vmem:[%s0 + $0x230] sm:$0xff]
  %v97 = vld [vmem:[%s0 + $0x238] sm:$0xff]
  %v98 = vld [vmem:[%s0 + $0x240] sm:$0xff]
  %v99 = vld [vmem:[%s0 + $0x248] sm:$0xff]
  %v100 = vld [vmem:[%s0 + $0x250] sm:$0xff]
  %v101 = vld [vmem:[%s0 + $0x258] sm:$0xff]
  %v102 = vld [vmem:[%s0 + $0x260] sm:$0xff]
  %v103 = vld [vmem:[%s0 + $0x268] sm:$0xff]
  %v104 = vld [vmem:[%s0 + $0x270] sm:$0xff]
  %v105 = vld [vmem:[%s0 + $0x278] sm:$0xff]
  %v106 = vld [vmem:[%s0 + $0x280] sm:$0xff]
  %v107 = vld [vmem:[%s0 + $0x288] sm:$0xff]
  %v108 = vld [vmem:[%s0 + $0x290] sm:$0xff]
  %v109 = vld [vmem:[%s0 + $0x298] sm:$0xff]
  %v110 = vld [vmem:[%s0 + $0x2a0] sm:$0xff]
  %v111 = vld [vmem:[%s0 + $0x2a8] sm:$0xff]
  %v112 = vld [vmem:[%s0 + $0x2b0] sm:$0xff]
  %v113 = vld [vmem:[%s0 + $0x2b8] sm:$0xff]
  %v114 = vld [vmem:[%s0 + $0x2c0] sm:$0xff]
  %v115 = vld [vmem:[%s0 + $0x2c8] sm:$0xff]
  %v116 = vld [vmem:[%s0 + $0x2d0] sm:$0xff]
  %v117 = vld [vmem:[%s0 + $0x2d8] sm:$0xff]
  %v118 = vld [vmem:[%s0 + $0x2e0] sm:$0xff]
  %v119 = vld [vmem:[%s0 + $0x2e8] sm:$0xff]
  %v120 = vld [vmem:[%s0 + $0x2f0] sm:$0xff]
  %v121 = vld [vmem:[%s0 + $0x2f8] sm:$0xff]
  %v122 = vld [vmem:[%s0 + $0x300] sm:$0xff]
  %v123 = vld [vmem:[%s0 + $0x308] sm:$0xff]
  %v124 = vld [vmem:[%s0 + $0x310] sm:$0xff]
  %v125 = vld [vmem:[%s0 + $0x318] sm:$0xff]
  %v126 = vld [vmem:[%s0 + $0x320] sm:$0xff]
  %v127 = vld [vmem:[%s0 + $0x328] sm:$0xff]
  %v128 = vld [vmem:[%s0 + $0x330] sm:$0xff]
  %v129 = vld [vmem:[%s0 + $0x338] sm:$0xff]
  %v130 = vld [vmem:[%s0 + $0x340] sm:$0xff]
  %v131 = vld [vmem:[%s0 + $0x348] sm:$0xff]
  %v132 = vld [vmem:[%s0 + $0x350] sm:$0xff]
  %v133 = vld [vmem:[%s0 + $0x358] sm:$0xff]
  %v134 = vld [vmem:[%s0 + $0x360] sm:$0xff]
  %v135 = vld [vmem:[%s0 + $0x368] sm:$0xff]
  %v136 = vld [vmem:[%s0 + $0x370] sm:$0xff]
  %v137 = vld [vmem:[%s0 + $0x378] sm:$0xff]
  %v138 = vld [vmem:[%s0 + $0x380] sm:$0xff]
  %v139 = vld [vmem:[%s0 + $0x388] sm:$0xff]
  %v140 = vld [vmem:[%s0 + $0x390] sm:$0xff]
  %v141 = vld [vmem:[%s0 + $0x398] sm:$0xff]
  %v142 = vld [vmem:[%s0 + $0x3a0] sm:$0xff]
  %v143 = vld [vmem:[%s0 + $0x3a8] sm:$0xff]
  %v144 = vld [vmem:[%s0 + $0x3b0] sm:$0xff]
  %v145 = vld [vmem:[%s0 + $0x3b8] sm:$0xff]
  %v146 = vld [vmem:[%s0 + $0x3c0] sm:$0xff]
  %v147 = vld [vmem:[%s0 + $0x3c8] sm:$0xff]
  %v148 = vld [vmem:[%s0 + $0x3d0] sm:$0xff]
  %v149 = vld [vmem:[%s0 + $0x3d8] sm:$0xff]
  %v150 = vld [vmem:[%s0 + $0x3e0] sm:$0xff]
  %v151 = vld [vmem:[%s0 + $0x3e8] sm:$0xff]
  %v152 = vld [vmem:[%s0 + $0x3f0] sm:$0xff]
  %v153 = vld [vmem:[%s0 + $0x3f8] sm:$0xff]
  %v154 = vld [vmem:[%s1] sm:$0xff]
  %v155 = vld [vmem:[%s1 + $0x8] sm:$0xff]
  %v156 = vld [vmem:[%s1 + $0x10] sm:$0xff]
  %v157 = vld [vmem:[%s1 + $0x18] sm:$0xff]
  %v158 = vld [vmem:[%s2] sm:$0x3]
  %v160 = vlaneseq
  %v161 = vshrl.u32 %v160, 7
  %v162 = vsub.s32 0, %v161
  %v163 = vrot.slane %v158, %v162
  %v164 = vlaneseq
  %v165 = vshrl.u32 %v164, 7
  %v166 = vsub.s32 1, %v165
  %v167 = vrot.slane %v158, %v166
  %vm170 = vcmask 130048
  %v172 = vsel %vm170, %v26, 0
  %v175 = vsel %vm170, %v27, 0
  %v178 = vsel %vm170, %v28, 0
  %v181 = vsel %vm170, %v29, 0
  %v184 = vsel %vm170, %v30, 0
  %v187 = vsel %vm170, %v31, 0
  %v190 = vsel %vm170, %v32, 0
  %v193 = vsel %vm170, %v33, 0
  %v196 = vsel %vm170, %v34, 0
  %v199 = vsel %vm170, %v35, 0
  %v202 = vsel %vm170, %v36, 0
  %v205 = vsel %vm170, %v37, 0
  %v208 = vsel %vm170, %v38, 0
  %v211 = vsel %vm170, %v39, 0
  %v214 = vsel %vm170, %v40, 0
  %v217 = vsel %vm170, %v41, 0
  %v220 = vsel %vm170, %v42, 0
  %v223 = vsel %vm170, %v43, 0
  %v226 = vsel %vm170, %v44, 0
  %v229 = vsel %vm170, %v45, 0
  %v232 = vsel %vm170, %v46, 0
  %v235 = vsel %vm170, %v47, 0
  %v238 = vsel %vm170, %v48, 0
  %v241 = vsel %vm170, %v49, 0
  %v244 = vsel %vm170, %v50, 0
  %v247 = vsel %vm170, %v51, 0
  %v250 = vsel %vm170, %v52, 0
  %v253 = vsel %vm170, %v53, 0
  %v256 = vsel %vm170, %v54, 0
  %v259 = vsel %vm170, %v55, 0
  %v262 = vsel %vm170, %v56, 0
  %v265 = vsel %vm170, %v57, 0
  %v268 = vsel %vm170, %v58, 0
  %v271 = vsel %vm170, %v59, 0
  %v274 = vsel %vm170, %v60, 0
  %v277 = vsel %vm170, %v61, 0
  %v280 = vsel %vm170, %v62, 0
  %v283 = vsel %vm170, %v63, 0
  %v286 = vsel %vm170, %v64, 0
  %v289 = vsel %vm170, %v65, 0
  %v292 = vsel %vm170, %v66, 0
  %v295 = vsel %vm170, %v67, 0
  %v298 = vsel %vm170, %v68, 0
  %v301 = vsel %vm170, %v69, 0
  %v304 = vsel %vm170, %v70, 0
  %v307 = vsel %vm170, %v71, 0
  %v310 = vsel %vm170, %v72, 0
  %v313 = vsel %vm170, %v73, 0
  %v316 = vsel %vm170, %v74, 0
  %v319 = vsel %vm170, %v75, 0
  %v322 = vsel %vm170, %v76, 0
  %v325 = vsel %vm170, %v77, 0
  %v328 = vsel %vm170, %v78, 0
  %v331 = vsel %vm170, %v79, 0
  %v334 = vsel %vm170, %v80, 0
  %v337 = vsel %vm170, %v81, 0
  %v340 = vsel %vm170, %v82, 0
  %v343 = vsel %vm170, %v83, 0
  %v346 = vsel %vm170, %v84, 0
  %v349 = vsel %vm170, %v85, 0
  %v352 = vsel %vm170, %v86, 0
  %v355 = vsel %vm170, %v87, 0
  %v358 = vsel %vm170, %v88, 0
  %v361 = vsel %vm170, %v89, 0
  %v364 = vsel %vm170, %v90, 0
  %v367 = vsel %vm170, %v91, 0
  %v370 = vsel %vm170, %v92, 0
  %v373 = vsel %vm170, %v93, 0
  %v376 = vsel %vm170, %v94, 0
  %v379 = vsel %vm170, %v95, 0
  %v382 = vsel %vm170, %v96, 0
  %v385 = vsel %vm170, %v97, 0
  %v388 = vsel %vm170, %v98, 0
  %v391 = vsel %vm170, %v99, 0
  %v394 = vsel %vm170, %v100, 0
  %v397 = vsel %vm170, %v101, 0
  %v400 = vsel %vm170, %v102, 0
  %v403 = vsel %vm170, %v103, 0
  %v406 = vsel %vm170, %v104, 0
  %v409 = vsel %vm170, %v105, 0
  %v412 = vsel %vm170, %v106, 0
  %v415 = vsel %vm170, %v107, 0
  %v418 = vsel %vm170, %v108, 0
  %v421 = vsel %vm170, %v109, 0
  %v424 = vsel %vm170, %v110, 0
  %v427 = vsel %vm170, %v111, 0
  %v430 = vsel %vm170, %v112, 0
  %v433 = vsel %vm170, %v113, 0
  %v436 = vsel %vm170, %v114, 0
  %v439 = vsel %vm170, %v115, 0
  %v442 = vsel %vm170, %v116, 0
  %v445 = vsel %vm170, %v117, 0
  %v448 = vsel %vm170, %v118, 0
  %v451 = vsel %vm170, %v119, 0
  %v454 = vsel %vm170, %v120, 0
  %v457 = vsel %vm170, %v121, 0
  %v460 = vsel %vm170, %v122, 0
  %v463 = vsel %vm170, %v123, 0
  %v466 = vsel %vm170, %v124, 0
  %v469 = vsel %vm170, %v125, 0
  %v472 = vsel %vm170, %v126, 0
  %v475 = vsel %vm170, %v127, 0
  %v478 = vsel %vm170, %v128, 0
  %v481 = vsel %vm170, %v129, 0
  %v484 = vsel %vm170, %v130, 0
  %v487 = vsel %vm170, %v131, 0
  %v490 = vsel %vm170, %v132, 0
  %v493 = vsel %vm170, %v133, 0
  %v496 = vsel %vm170, %v134, 0
  %v499 = vsel %vm170, %v135, 0
  %v502 = vsel %vm170, %v136, 0
  %v505 = vsel %vm170, %v137, 0
  %v508 = vsel %vm170, %v138, 0
  %v511 = vsel %vm170, %v139, 0
  %v514 = vsel %vm170, %v140, 0
  %v517 = vsel %vm170, %v141, 0
  %v520 = vsel %vm170, %v142, 0
  %v523 = vsel %vm170, %v143, 0
  %v526 = vsel %vm170, %v144, 0
  %v529 = vsel %vm170, %v145, 0
  %v532 = vsel %vm170, %v146, 0
  %v535 = vsel %vm170, %v147, 0
  %v538 = vsel %vm170, %v148, 0
  %v541 = vsel %vm170, %v149, 0
  %v544 = vsel %vm170, %v150, 0
  %v547 = vsel %vm170, %v151, 0
  %v550 = vsel %vm170, %v152, 0
  %v553 = vsel %vm170, %v153, 0
  %555 = vmatprep.subr.mxu0 %v155
  %556 = vmatpush1.msra.mxu0 %v154
  %557 = vmatprep.subr.mxu0 %v157
  %558 = vmatpush1.msra.mxu0 %v156
  %559 = vmatprep.subr.mxu0 0.0
  %560 = vmatpush1.msra.mxu0 0.0
  %561 = vmatprep.subr.mxu0 0.0
  %562 = vmatpush1.msra.mxu0 0.0
  %563 = vmatprep.subr.mxu0 0.0
  %564 = vmatpush1.msra.mxu0 0.0
  %565 = vmatprep.subr.mxu0 0.0
  %566 = vmatpush1.msra.mxu0 0.0
  %567 = vmatprep.subr.mxu0 0.0
  %568 = vmatpush1.msra.mxu0 0.0
  %569 = vmatprep.subr.mxu0 0.0
  %570 = vmatpush1.msra.mxu0 0.0
  %571 = vmatprep.subr.mxu0 0.0
  %572 = vmatpush1.msra.mxu0 0.0
  %573 = vmatprep.subr.mxu0 0.0
  %574 = vmatpush1.msra.mxu0 0.0
  %575 = vmatprep.subr.mxu0 0.0
  %576 = vmatpush1.msra.mxu0 0.0
  %577 = vmatprep.subr.mxu0 0.0
  %578 = vmatpush1.msra.mxu0 0.0
  %579 = vmatprep.subr.mxu0 0.0
  %580 = vmatpush1.msra.mxu0 0.0
  %581 = vmatprep.subr.mxu0 0.0
  %582 = vmatpush1.msra.mxu0 0.0
  %583 = vmatprep.subr.mxu0 0.0
  %584 = vmatpush1.msra.mxu0 0.0
  %585 = vmatprep.subr.mxu0 0.0
  %586 = vmatpush1.msra.mxu0 0.0
  %587 = vmatprep.subr.mxu0 0.0
  %588 = vmatpush1.msra.mxu0 0.0
  %589 = vmatprep.subr.mxu0 0.0
  %590 = vmatpush1.msra.mxu0 0.0
  %591 = vmatprep.subr.mxu0 0.0
  %592 = vmatpush1.msra.mxu0 0.0
  %593 = vmatprep.subr.mxu0 0.0
  %594 = vmatpush1.msra.mxu0 0.0
  %595 = vmatprep.subr.mxu0 0.0
  %596 = vmatpush1.msra.mxu0 0.0
  %597 = vmatprep.subr.mxu0 0.0
  %598 = vmatpush1.msra.mxu0 0.0
  %599 = vmatprep.subr.mxu0 0.0
  %600 = vmatpush1.msra.mxu0 0.0
  %601 = vmatprep.subr.mxu0 0.0
  %602 = vmatpush1.msra.mxu0 0.0
  %603 = vmatprep.subr.mxu0 0.0
  %604 = vmatpush1.msra.mxu0 0.0
  %605 = vmatprep.subr.mxu0 0.0
  %606 = vmatpush1.msra.mxu0 0.0
  %607 = vmatprep.subr.mxu0 0.0
  %608 = vmatpush1.msra.mxu0 0.0
  %609 = vmatprep.subr.mxu0 0.0
  %610 = vmatpush1.msra.mxu0 0.0
  %611 = vmatprep.subr.mxu0 0.0
  %612 = vmatpush1.msra.mxu0 0.0
  %613 = vmatprep.subr.mxu0 0.0
  %614 = vmatpush1.msra.mxu0 0.0
  %615 = vmatprep.subr.mxu0 0.0
  %616 = vmatpush1.msra.mxu0 0.0
  %617 = vmatprep.subr.mxu0 0.0
  %618 = vmatpush1.msra.mxu0 0.0
  %619 = vmatprep.mubr.f32.mxu0 0.0
  %620 = vmatmul.mubr.f32.gmra.mrb[0].mxu0 %v172
  %v621 = vpop.f32.mrb[0].mxu0
  %v622 = vadd.f32 %v163, %v621
  %v623 = vpop.f32.mrb[0].mxu0
  %v624 = vadd.f32 %v167, %v623
  %625 = vmatprep.mubr.f32.mxu0 0.0
  %626 = vmatmul.mubr.f32.gmra.mrb[0].mxu0 %v175
  %v627 = vpop.f32.mrb[0].mxu0
  %v628 = vadd.f32 %v163, %v627
  %v629 = vpop.f32.mrb[0].mxu0
  %v630 = vadd.f32 %v167, %v629
  %631 = vmatprep.mubr.f32.mxu0 0.0
  %632 = vmatmul.mubr.f32.gmra.mrb[0].mxu0 %v178
  %v633 = vpop.f32.mrb[0].mxu0
  %v634 = vadd.f32 %v163, %v633
  %v635 = vpop.f32.mrb[0].mxu0
  %v636 = vadd.f32 %v167, %v635
  %637 = vmatprep.mubr.f32.mxu0 0.0
  %638 = vmatmul.mubr.f32.gmra.mrb[0].mxu0 %v181
  %v639 = vpop.f32.mrb[0].mxu0
  %v640 = vadd.f32 %v163, %v639
  %v641 = vpop.f32.mrb[0].mxu0
  %v642 = vadd.f32 %v167, %v641
  %643 = vmatprep.mubr.f32.mxu0 0.0
  %644 = vmatmul.mubr.f32.gmra.mrb[0].mxu0 %v184
  %v645 = vpop.f32.mrb[0].mxu0
  %v646 = vadd.f32 %v163, %v645
  %v647 = vpop.f32.mrb[0].mxu0
  %v648 = vadd.f32 %v167, %v647
  %649 = vmatprep.mubr.f32.mxu0 0.0
  %650 = vmatmul.mubr.f32.gmra.mrb[0].mxu0 %v187
  %v651 = vpop.f32.mrb[0].mxu0
  %v652 = vadd.f32 %v163, %v651
  %v653 = vpop.f32.mrb[0].mxu0
  %v654 = vadd.f32 %v167, %v653
  %655 = vmatprep.mubr.f32.mxu0 0.0
  %656 = vmatmul.mubr.f32.gmra.mrb[0].mxu0 %v190
  %v657 = vpop.f32.mrb[0].mxu0
  %v658 = vadd.f32 %v163, %v657
  %v659 = vpop.f32.mrb[0].mxu0
  %v660 = vadd.f32 %v167, %v659
  %661 = vmatprep.mubr.f32.mxu0 0.0
  %662 = vmatmul.mubr.f32.gmra.mrb[0].mxu0 %v193
  %v663 = vpop.f32.mrb[0].mxu0
  %v664 = vadd.f32 %v163, %v663
  %v665 = vpop.f32.mrb[0].mxu0
  %v666 = vadd.f32 %v167, %v665
  %667 = vmatprep.mubr.f32.mxu0 0.0
  %668 = vmatmul.mubr.f32.gmra.mrb[0].mxu0 %v196
  %v669 = vpop.f32.mrb[0].mxu0
  %v670 = vadd.f32 %v163, %v669
  %v671 = vpop.f32.mrb[0].mxu0
  %v672 = vadd.f32 %v167, %v671
  %673 = vmatprep.mubr.f32.mxu0 0.0
  %674 = vmatmul.mubr.f32.gmra.mrb[0].mxu0 %v199
  %v675 = vpop.f32.mrb[0].mxu0
  %v676 = vadd.f32 %v163, %v675
  %v677 = vpop.f32.mrb[0].mxu0
  %v678 = vadd.f32 %v167, %v677
  %679 = vmatprep.mubr.f32.mxu0 0.0
  %680 = vmatmul.mubr.f32.gmra.mrb[0].mxu0 %v202
  %v681 = vpop.f32.mrb[0].mxu0
  %v682 = vadd.f32 %v163, %v681
  %v683 = vpop.f32.mrb[0].mxu0
  %v684 = vadd.f32 %v167, %v683
  %685 = vmatprep.mubr.f32.mxu0 0.0
  %686 = vmatmul.mubr.f32.gmra.mrb[0].mxu0 %v205
  %v687 = vpop.f32.mrb[0].mxu0
  %v688 = vadd.f32 %v163, %v687
  %v689 = vpop.f32.mrb[0].mxu0
  %v690 = vadd.f32 %v167, %v689
  %691 = vmatprep.mubr.f32.mxu0 0.0
  %692 = vmatmul.mubr.f32.gmra.mrb[0].mxu0 %v208
  %v693 = vpop.f32.mrb[0].mxu0
  %v694 = vadd.f32 %v163, %v693
  %v695 = vpop.f32.mrb[0].mxu0
  %v696 = vadd.f32 %v167, %v695
  %697 = vmatprep.mubr.f32.mxu0 0.0
  %698 = vmatmul.mubr.f32.gmra.mrb[0].mxu0 %v211
  %v699 = vpop.f32.mrb[0].mxu0
  %v700 = vadd.f32 %v163, %v699
  %v701 = vpop.f32.mrb[0].mxu0
  %v702 = vadd.f32 %v167, %v701
  %703 = vmatprep.mubr.f32.mxu0 0.0
  %704 = vmatmul.mubr.f32.gmra.mrb[0].mxu0 %v214
  %v705 = vpop.f32.mrb[0].mxu0
  %v706 = vadd.f32 %v163, %v705
  %v707 = vpop.f32.mrb[0].mxu0
  %v708 = vadd.f32 %v167, %v707
  %709 = vmatprep.mubr.f32.mxu0 0.0
  %710 = vmatmul.mubr.f32.gmra.mrb[0].mxu0 %v217
  %v711 = vpop.f32.mrb[0].mxu0
  %v712 = vadd.f32 %v163, %v711
  %v713 = vpop.f32.mrb[0].mxu0
  %v714 = vadd.f32 %v167, %v713
  %715 = vmatprep.mubr.f32.mxu0 0.0
  %716 = vmatmul.mubr.f32.gmra.mrb[0].mxu0 %v220
  %v717 = vpop.f32.mrb[0].mxu0
  %v718 = vadd.f32 %v163, %v717
  %v719 = vpop.f32.mrb[0].mxu0
  %v720 = vadd.f32 %v167, %v719
  %721 = vmatprep.mubr.f32.mxu0 0.0
  %722 = vmatmul.mubr.f32.gmra.mrb[0].mxu0 %v223
  %v723 = vpop.f32.mrb[0].mxu0
  %v724 = vadd.f32 %v163, %v723
  %v725 = vpop.f32.mrb[0].mxu0
  %v726 = vadd.f32 %v167, %v725
  %727 = vmatprep.mubr.f32.mxu0 0.0
  %728 = vmatmul.mubr.f32.gmra.mrb[0].mxu0 %v226
  %v729 = vpop.f32.mrb[0].mxu0
  %v730 = vadd.f32 %v163, %v729
  %v731 = vpop.f32.mrb[0].mxu0
  %v732 = vadd.f32 %v167, %v731
  %733 = vmatprep.mubr.f32.mxu0 0.0
  %734 = vmatmul.mubr.f32.gmra.mrb[0].mxu0 %v229
  %v735 = vpop.f32.mrb[0].mxu0
  %v736 = vadd.f32 %v163, %v735
  %v737 = vpop.f32.mrb[0].mxu0
  %v738 = vadd.f32 %v167, %v737
  %739 = vmatprep.mubr.f32.mxu0 0.0
  %740 = vmatmul.mubr.f32.gmra.mrb[0].mxu0 %v232
  %v741 = vpop.f32.mrb[0].mxu0
  %v742 = vadd.f32 %v163, %v741
  %v743 = vpop.f32.mrb[0].mxu0
  %v744 = vadd.f32 %v167, %v743
  %745 = vmatprep.mubr.f32.mxu0 0.0
  %746 = vmatmul.mubr.f32.gmra.mrb[0].mxu0 %v235
  %v747 = vpop.f32.mrb[0].mxu0
  %v748 = vadd.f32 %v163, %v747
  %v749 = vpop.f32.mrb[0].mxu0
  %v750 = vadd.f32 %v167, %v749
  %751 = vmatprep.mubr.f32.mxu0 0.0
  %752 = vmatmul.mubr.f32.gmra.mrb[0].mxu0 %v238
  %v753 = vpop.f32.mrb[0].mxu0
  %v754 = vadd.f32 %v163, %v753
  %v755 = vpop.f32.mrb[0].mxu0
  %v756 = vadd.f32 %v167, %v755
  %757 = vmatprep.mubr.f32.mxu0 0.0
  %758 = vmatmul.mubr.f32.gmra.mrb[0].mxu0 %v241
  %v759 = vpop.f32.mrb[0].mxu0
  %v760 = vadd.f32 %v163, %v759
  %v761 = vpop.f32.mrb[0].mxu0
  %v762 = vadd.f32 %v167, %v761
  %763 = vmatprep.mubr.f32.mxu0 0.0
  %764 = vmatmul.mubr.f32.gmra.mrb[0].mxu0 %v244
  %v765 = vpop.f32.mrb[0].mxu0
  %v766 = vadd.f32 %v163, %v765
  %v767 = vpop.f32.mrb[0].mxu0
  %v768 = vadd.f32 %v167, %v767
  %769 = vmatprep.mubr.f32.mxu0 0.0
  %770 = vmatmul.mubr.f32.gmra.mrb[0].mxu0 %v247
  %v771 = vpop.f32.mrb[0].mxu0
  %v772 = vadd.f32 %v163, %v771
  %v773 = vpop.f32.mrb[0].mxu0
  %v774 = vadd.f32 %v167, %v773
  %775 = vmatprep.mubr.f32.mxu0 0.0
  %776 = vmatmul.mubr.f32.gmra.mrb[0].mxu0 %v250
  %v777 = vpop.f32.mrb[0].mxu0
  %v778 = vadd.f32 %v163, %v777
  %v779 = vpop.f32.mrb[0].mxu0
  %v780 = vadd.f32 %v167, %v779
  %781 = vmatprep.mubr.f32.mxu0 0.0
  %782 = vmatmul.mubr.f32.gmra.mrb[0].mxu0 %v253
  %v783 = vpop.f32.mrb[0].mxu0
  %v784 = vadd.f32 %v163, %v783
  %v785 = vpop.f32.mrb[0].mxu0
  %v786 = vadd.f32 %v167, %v785
  %787 = vmatprep.mubr.f32.mxu0 0.0
  %788 = vmatmul.mubr.f32.gmra.mrb[0].mxu0 %v256
  %v789 = vpop.f32.mrb[0].mxu0
  %v790 = vadd.f32 %v163, %v789
  %v791 = vpop.f32.mrb[0].mxu0
  %v792 = vadd.f32 %v167, %v791
  %793 = vmatprep.mubr.f32.mxu0 0.0
  %794 = vmatmul.mubr.f32.gmra.mrb[0].mxu0 %v259
  %v795 = vpop.f32.mrb[0].mxu0
  %v796 = vadd.f32 %v163, %v795
  %v797 = vpop.f32.mrb[0].mxu0
  %v798 = vadd.f32 %v167, %v797
  %799 = vmatprep.mubr.f32.mxu0 0.0
  %800 = vmatmul.mubr.f32.gmra.mrb[0].mxu0 %v262
  %v801 = vpop.f32.mrb[0].mxu0
  %v802 = vadd.f32 %v163, %v801
  %v803 = vpop.f32.mrb[0].mxu0
  %v804 = vadd.f32 %v167, %v803
  %805 = vmatprep.mubr.f32.mxu0 0.0
  %806 = vmatmul.mubr.f32.gmra.mrb[0].mxu0 %v265
  %v807 = vpop.f32.mrb[0].mxu0
  %v808 = vadd.f32 %v163, %v807
  %v809 = vpop.f32.mrb[0].mxu0
  %v810 = vadd.f32 %v167, %v809
  %811 = vmatprep.mubr.f32.mxu0 0.0
  %812 = vmatmul.mubr.f32.gmra.mrb[0].mxu0 %v268
  %v813 = vpop.f32.mrb[0].mxu0
  %v814 = vadd.f32 %v163, %v813
  %v815 = vpop.f32.mrb[0].mxu0
  %v816 = vadd.f32 %v167, %v815
  %817 = vmatprep.mubr.f32.mxu0 0.0
  %818 = vmatmul.mubr.f32.gmra.mrb[0].mxu0 %v271
  %v819 = vpop.f32.mrb[0].mxu0
  %v820 = vadd.f32 %v163, %v819
  %v821 = vpop.f32.mrb[0].mxu0
  %v822 = vadd.f32 %v167, %v821
  %823 = vmatprep.mubr.f32.mxu0 0.0
  %824 = vmatmul.mubr.f32.gmra.mrb[0].mxu0 %v274
  %v825 = vpop.f32.mrb[0].mxu0
  %v826 = vadd.f32 %v163, %v825
  %v827 = vpop.f32.mrb[0].mxu0
  %v828 = vadd.f32 %v167, %v827
  %829 = vmatprep.mubr.f32.mxu0 0.0
  %830 = vmatmul.mubr.f32.gmra.mrb[0].mxu0 %v277
  %v831 = vpop.f32.mrb[0].mxu0
  %v832 = vadd.f32 %v163, %v831
  %v833 = vpop.f32.mrb[0].mxu0
  %v834 = vadd.f32 %v167, %v833
  %835 = vmatprep.mubr.f32.mxu0 0.0
  %836 = vmatmul.mubr.f32.gmra.mrb[0].mxu0 %v280
  %v837 = vpop.f32.mrb[0].mxu0
  %v838 = vadd.f32 %v163, %v837
  %v839 = vpop.f32.mrb[0].mxu0
  %v840 = vadd.f32 %v167, %v839
  %841 = vmatprep.mubr.f32.mxu0 0.0
  %842 = vmatmul.mubr.f32.gmra.mrb[0].mxu0 %v283
  %v843 = vpop.f32.mrb[0].mxu0
  %v844 = vadd.f32 %v163, %v843
  %v845 = vpop.f32.mrb[0].mxu0
  %v846 = vadd.f32 %v167, %v845
  %847 = vmatprep.mubr.f32.mxu0 0.0
  %848 = vmatmul.mubr.f32.gmra.mrb[0].mxu0 %v286
  %v849 = vpop.f32.mrb[0].mxu0
  %v850 = vadd.f32 %v163, %v849
  %v851 = vpop.f32.mrb[0].mxu0
  %v852 = vadd.f32 %v167, %v851
  %853 = vmatprep.mubr.f32.mxu0 0.0
  %854 = vmatmul.mubr.f32.gmra.mrb[0].mxu0 %v289
  %v855 = vpop.f32.mrb[0].mxu0
  %v856 = vadd.f32 %v163, %v855
  %v857 = vpop.f32.mrb[0].mxu0
  %v858 = vadd.f32 %v167, %v857
  %859 = vmatprep.mubr.f32.mxu0 0.0
  %860 = vmatmul.mubr.f32.gmra.mrb[0].mxu0 %v292
  %v861 = vpop.f32.mrb[0].mxu0
  %v862 = vadd.f32 %v163, %v861
  %v863 = vpop.f32.mrb[0].mxu0
  %v864 = vadd.f32 %v167, %v863
  %865 = vmatprep.mubr.f32.mxu0 0.0
  %866 = vmatmul.mubr.f32.gmra.mrb[0].mxu0 %v295
  %v867 = vpop.f32.mrb[0].mxu0
  %v868 = vadd.f32 %v163, %v867
  %v869 = vpop.f32.mrb[0].mxu0
  %v870 = vadd.f32 %v167, %v869
  %871 = vmatprep.mubr.f32.mxu0 0.0
  %872 = vmatmul.mubr.f32.gmra.mrb[0].mxu0 %v298
  %v873 = vpop.f32.mrb[0].mxu0
  %v874 = vadd.f32 %v163, %v873
  %v875 = vpop.f32.mrb[0].mxu0
  %v876 = vadd.f32 %v167, %v875
  %877 = vmatprep.mubr.f32.mxu0 0.0
  %878 = vmatmul.mubr.f32.gmra.mrb[0].mxu0 %v301
  %v879 = vpop.f32.mrb[0].mxu0
  %v880 = vadd.f32 %v163, %v879
  %v881 = vpop.f32.mrb[0].mxu0
  %v882 = vadd.f32 %v167, %v881
  %883 = vmatprep.mubr.f32.mxu0 0.0
  %884 = vmatmul.mubr.f32.gmra.mrb[0].mxu0 %v304
  %v885 = vpop.f32.mrb[0].mxu0
  %v886 = vadd.f32 %v163, %v885
  %v887 = vpop.f32.mrb[0].mxu0
  %v888 = vadd.f32 %v167, %v887
  %889 = vmatprep.mubr.f32.mxu0 0.0
  %890 = vmatmul.mubr.f32.gmra.mrb[0].mxu0 %v307
  %v891 = vpop.f32.mrb[0].mxu0
  %v892 = vadd.f32 %v163, %v891
  %v893 = vpop.f32.mrb[0].mxu0
  %v894 = vadd.f32 %v167, %v893
  %895 = vmatprep.mubr.f32.mxu0 0.0
  %896 = vmatmul.mubr.f32.gmra.mrb[0].mxu0 %v310
  %v897 = vpop.f32.mrb[0].mxu0
  %v898 = vadd.f32 %v163, %v897
  %v899 = vpop.f32.mrb[0].mxu0
  %v900 = vadd.f32 %v167, %v899
  %901 = vmatprep.mubr.f32.mxu0 0.0
  %902 = vmatmul.mubr.f32.gmra.mrb[0].mxu0 %v313
  %v903 = vpop.f32.mrb[0].mxu0
  %v904 = vadd.f32 %v163, %v903
  %v905 = vpop.f32.mrb[0].mxu0
  %v906 = vadd.f32 %v167, %v905
  %907 = vmatprep.mubr.f32.mxu0 0.0
  %908 = vmatmul.mubr.f32.gmra.mrb[0].mxu0 %v316
  %v909 = vpop.f32.mrb[0].mxu0
  %v910 = vadd.f32 %v163, %v909
  %v911 = vpop.f32.mrb[0].mxu0
  %v912 = vadd.f32 %v167, %v911
  %913 = vmatprep.mubr.f32.mxu0 0.0
  %914 = vmatmul.mubr.f32.gmra.mrb[0].mxu0 %v319
  %v915 = vpop.f32.mrb[0].mxu0
  %v916 = vadd.f32 %v163, %v915
  %v917 = vpop.f32.mrb[0].mxu0
  %v918 = vadd.f32 %v167, %v917
  %919 = vmatprep.mubr.f32.mxu0 0.0
  %920 = vmatmul.mubr.f32.gmra.mrb[0].mxu0 %v322
  %v921 = vpop.f32.mrb[0].mxu0
  %v922 = vadd.f32 %v163, %v921
  %v923 = vpop.f32.mrb[0].mxu0
  %v924 = vadd.f32 %v167, %v923
  %925 = vmatprep.mubr.f32.mxu0 0.0
  %926 = vmatmul.mubr.f32.gmra.mrb[0].mxu0 %v325
  %v927 = vpop.f32.mrb[0].mxu0
  %v928 = vadd.f32 %v163, %v927
  %v929 = vpop.f32.mrb[0].mxu0
  %v930 = vadd.f32 %v167, %v929
  %931 = vmatprep.mubr.f32.mxu0 0.0
  %932 = vmatmul.mubr.f32.gmra.mrb[0].mxu0 %v328
  %v933 = vpop.f32.mrb[0].mxu0
  %v934 = vadd.f32 %v163, %v933
  %v935 = vpop.f32.mrb[0].mxu0
  %v936 = vadd.f32 %v167, %v935
  %937 = vmatprep.mubr.f32.mxu0 0.0
  %938 = vmatmul.mubr.f32.gmra.mrb[0].mxu0 %v331
  %v939 = vpop.f32.mrb[0].mxu0
  %v940 = vadd.f32 %v163, %v939
  %v941 = vpop.f32.mrb[0].mxu0
  %v942 = vadd.f32 %v167, %v941
  %943 = vmatprep.mubr.f32.mxu0 0.0
  %944 = vmatmul.mubr.f32.gmra.mrb[0].mxu0 %v334
  %v945 = vpop.f32.mrb[0].mxu0
  %v946 = vadd.f32 %v163, %v945
  %v947 = vpop.f32.mrb[0].mxu0
  %v948 = vadd.f32 %v167, %v947
  %949 = vmatprep.mubr.f32.mxu0 0.0
  %950 = vmatmul.mubr.f32.gmra.mrb[0].mxu0 %v337
  %v951 = vpop.f32.mrb[0].mxu0
  %v952 = vadd.f32 %v163, %v951
  %v953 = vpop.f32.mrb[0].mxu0
  %v954 = vadd.f32 %v167, %v953
  %955 = vmatprep.mubr.f32.mxu0 0.0
  %956 = vmatmul.mubr.f32.gmra.mrb[0].mxu0 %v340
  %v957 = vpop.f32.mrb[0].mxu0
  %v958 = vadd.f32 %v163, %v957
  %v959 = vpop.f32.mrb[0].mxu0
  %v960 = vadd.f32 %v167, %v959
  %961 = vmatprep.mubr.f32.mxu0 0.0
  %962 = vmatmul.mubr.f32.gmra.mrb[0].mxu0 %v343
  %v963 = vpop.f32.mrb[0].mxu0
  %v964 = vadd.f32 %v163, %v963
  %v965 = vpop.f32.mrb[0].mxu0
  %v966 = vadd.f32 %v167, %v965
  %967 = vmatprep.mubr.f32.mxu0 0.0
  %968 = vmatmul.mubr.f32.gmra.mrb[0].mxu0 %v346
  %v969 = vpop.f32.mrb[0].mxu0
  %v970 = vadd.f32 %v163, %v969
  %v971 = vpop.f32.mrb[0].mxu0
  %v972 = vadd.f32 %v167, %v971
  %973 = vmatprep.mubr.f32.mxu0 0.0
  %974 = vmatmul.mubr.f32.gmra.mrb[0].mxu0 %v349
  %v975 = vpop.f32.mrb[0].mxu0
  %v976 = vadd.f32 %v163, %v975
  %v977 = vpop.f32.mrb[0].mxu0
  %v978 = vadd.f32 %v167, %v977
  %979 = vmatprep.mubr.f32.mxu0 0.0
  %980 = vmatmul.mubr.f32.gmra.mrb[0].mxu0 %v352
  %v981 = vpop.f32.mrb[0].mxu0
  %v982 = vadd.f32 %v163, %v981
  %v983 = vpop.f32.mrb[0].mxu0
  %v984 = vadd.f32 %v167, %v983
  %985 = vmatprep.mubr.f32.mxu0 0.0
  %986 = vmatmul.mubr.f32.gmra.mrb[0].mxu0 %v355
  %v987 = vpop.f32.mrb[0].mxu0
  %v988 = vadd.f32 %v163, %v987
  %v989 = vpop.f32.mrb[0].mxu0
  %v990 = vadd.f32 %v167, %v989
  %991 = vmatprep.mubr.f32.mxu0 0.0
  %992 = vmatmul.mubr.f32.gmra.mrb[0].mxu0 %v358
  %v993 = vpop.f32.mrb[0].mxu0
  %v994 = vadd.f32 %v163, %v993
  %v995 = vpop.f32.mrb[0].mxu0
  %v996 = vadd.f32 %v167, %v995
  %997 = vmatprep.mubr.f32.mxu0 0.0
  %998 = vmatmul.mubr.f32.gmra.mrb[0].mxu0 %v361
  %v999 = vpop.f32.mrb[0].mxu0
  %v1000 = vadd.f32 %v163, %v999
  %v1001 = vpop.f32.mrb[0].mxu0
  %v1002 = vadd.f32 %v167, %v1001
  %1003 = vmatprep.mubr.f32.mxu0 0.0
  %1004 = vmatmul.mubr.f32.gmra.mrb[0].mxu0 %v364
  %v1005 = vpop.f32.mrb[0].mxu0
  %v1006 = vadd.f32 %v163, %v1005
  %v1007 = vpop.f32.mrb[0].mxu0
  %v1008 = vadd.f32 %v167, %v1007
  %1009 = vmatprep.mubr.f32.mxu0 0.0
  %1010 = vmatmul.mubr.f32.gmra.mrb[0].mxu0 %v367
  %v1011 = vpop.f32.mrb[0].mxu0
  %v1012 = vadd.f32 %v163, %v1011
  %v1013 = vpop.f32.mrb[0].mxu0
  %v1014 = vadd.f32 %v167, %v1013
  %1015 = vmatprep.mubr.f32.mxu0 0.0
  %1016 = vmatmul.mubr.f32.gmra.mrb[0].mxu0 %v370
  %v1017 = vpop.f32.mrb[0].mxu0
  %v1018 = vadd.f32 %v163, %v1017
  %v1019 = vpop.f32.mrb[0].mxu0
  %v1020 = vadd.f32 %v167, %v1019
  %1021 = vmatprep.mubr.f32.mxu0 0.0
  %1022 = vmatmul.mubr.f32.gmra.mrb[0].mxu0 %v373
  %v1023 = vpop.f32.mrb[0].mxu0
  %v1024 = vadd.f32 %v163, %v1023
  %v1025 = vpop.f32.mrb[0].mxu0
  %v1026 = vadd.f32 %v167, %v1025
  %1027 = vmatprep.mubr.f32.mxu0 0.0
  %1028 = vmatmul.mubr.f32.gmra.mrb[0].mxu0 %v376
  %v1029 = vpop.f32.mrb[0].mxu0
  %v1030 = vadd.f32 %v163, %v1029
  %v1031 = vpop.f32.mrb[0].mxu0
  %v1032 = vadd.f32 %v167, %v1031
  %1033 = vmatprep.mubr.f32.mxu0 0.0
  %1034 = vmatmul.mubr.f32.gmra.mrb[0].mxu0 %v379
  %v1035 = vpop.f32.mrb[0].mxu0
  %v1036 = vadd.f32 %v163, %v1035
  %v1037 = vpop.f32.mrb[0].mxu0
  %v1038 = vadd.f32 %v167, %v1037
  %1039 = vmatprep.mubr.f32.mxu0 0.0
  %1040 = vmatmul.mubr.f32.gmra.mrb[0].mxu0 %v382
  %v1041 = vpop.f32.mrb[0].mxu0
  %v1042 = vadd.f32 %v163, %v1041
  %v1043 = vpop.f32.mrb[0].mxu0
  %v1044 = vadd.f32 %v167, %v1043
  %1045 = vmatprep.mubr.f32.mxu0 0.0
  %1046 = vmatmul.mubr.f32.gmra.mrb[0].mxu0 %v385
  %v1047 = vpop.f32.mrb[0].mxu0
  %v1048 = vadd.f32 %v163, %v1047
  %v1049 = vpop.f32.mrb[0].mxu0
  %v1050 = vadd.f32 %v167, %v1049
  %1051 = vmatprep.mubr.f32.mxu0 0.0
  %1052 = vmatmul.mubr.f32.gmra.mrb[0].mxu0 %v388
  %v1053 = vpop.f32.mrb[0].mxu0
  %v1054 = vadd.f32 %v163, %v1053
  %v1055 = vpop.f32.mrb[0].mxu0
  %v1056 = vadd.f32 %v167, %v1055
  %1057 = vmatprep.mubr.f32.mxu0 0.0
  %1058 = vmatmul.mubr.f32.gmra.mrb[0].mxu0 %v391
  %v1059 = vpop.f32.mrb[0].mxu0
  %v1060 = vadd.f32 %v163, %v1059
  %v1061 = vpop.f32.mrb[0].mxu0
  %v1062 = vadd.f32 %v167, %v1061
  %1063 = vmatprep.mubr.f32.mxu0 0.0
  %1064 = vmatmul.mubr.f32.gmra.mrb[0].mxu0 %v394
  %v1065 = vpop.f32.mrb[0].mxu0
  %v1066 = vadd.f32 %v163, %v1065
  %v1067 = vpop.f32.mrb[0].mxu0
  %v1068 = vadd.f32 %v167, %v1067
  %1069 = vmatprep.mubr.f32.mxu0 0.0
  %1070 = vmatmul.mubr.f32.gmra.mrb[0].mxu0 %v397
  %v1071 = vpop.f32.mrb[0].mxu0
  %v1072 = vadd.f32 %v163, %v1071
  %v1073 = vpop.f32.mrb[0].mxu0
  %v1074 = vadd.f32 %v167, %v1073
  %1075 = vmatprep.mubr.f32.mxu0 0.0
  %1076 = vmatmul.mubr.f32.gmra.mrb[0].mxu0 %v400
  %v1077 = vpop.f32.mrb[0].mxu0
  %v1078 = vadd.f32 %v163, %v1077
  %v1079 = vpop.f32.mrb[0].mxu0
  %v1080 = vadd.f32 %v167, %v1079
  %1081 = vmatprep.mubr.f32.mxu0 0.0
  %1082 = vmatmul.mubr.f32.gmra.mrb[0].mxu0 %v403
  %v1083 = vpop.f32.mrb[0].mxu0
  %v1084 = vadd.f32 %v163, %v1083
  %v1085 = vpop.f32.mrb[0].mxu0
  %v1086 = vadd.f32 %v167, %v1085
  %1087 = vmatprep.mubr.f32.mxu0 0.0
  %1088 = vmatmul.mubr.f32.gmra.mrb[0].mxu0 %v406
  %v1089 = vpop.f32.mrb[0].mxu0
  %v1090 = vadd.f32 %v163, %v1089
  %v1091 = vpop.f32.mrb[0].mxu0
  %v1092 = vadd.f32 %v167, %v1091
  %1093 = vmatprep.mubr.f32.mxu0 0.0
  %1094 = vmatmul.mubr.f32.gmra.mrb[0].mxu0 %v409
  %v1095 = vpop.f32.mrb[0].mxu0
  %v1096 = vadd.f32 %v163, %v1095
  %v1097 = vpop.f32.mrb[0].mxu0
  %v1098 = vadd.f32 %v167, %v1097
  %1099 = vmatprep.mubr.f32.mxu0 0.0
  %1100 = vmatmul.mubr.f32.gmra.mrb[0].mxu0 %v412
  %v1101 = vpop.f32.mrb[0].mxu0
  %v1102 = vadd.f32 %v163, %v1101
  %v1103 = vpop.f32.mrb[0].mxu0
  %v1104 = vadd.f32 %v167, %v1103
  %1105 = vmatprep.mubr.f32.mxu0 0.0
  %1106 = vmatmul.mubr.f32.gmra.mrb[0].mxu0 %v415
  %v1107 = vpop.f32.mrb[0].mxu0
  %v1108 = vadd.f32 %v163, %v1107
  %v1109 = vpop.f32.mrb[0].mxu0
  %v1110 = vadd.f32 %v167, %v1109
  %1111 = vmatprep.mubr.f32.mxu0 0.0
  %1112 = vmatmul.mubr.f32.gmra.mrb[0].mxu0 %v418
  %v1113 = vpop.f32.mrb[0].mxu0
  %v1114 = vadd.f32 %v163, %v1113
  %v1115 = vpop.f32.mrb[0].mxu0
  %v1116 = vadd.f32 %v167, %v1115
  %1117 = vmatprep.mubr.f32.mxu0 0.0
  %1118 = vmatmul.mubr.f32.gmra.mrb[0].mxu0 %v421
  %v1119 = vpop.f32.mrb[0].mxu0
  %v1120 = vadd.f32 %v163, %v1119
  %v1121 = vpop.f32.mrb[0].mxu0
  %v1122 = vadd.f32 %v167, %v1121
  %1123 = vmatprep.mubr.f32.mxu0 0.0
  %1124 = vmatmul.mubr.f32.gmra.mrb[0].mxu0 %v424
  %v1125 = vpop.f32.mrb[0].mxu0
  %v1126 = vadd.f32 %v163, %v1125
  %v1127 = vpop.f32.mrb[0].mxu0
  %v1128 = vadd.f32 %v167, %v1127
  %1129 = vmatprep.mubr.f32.mxu0 0.0
  %1130 = vmatmul.mubr.f32.gmra.mrb[0].mxu0 %v427
  %v1131 = vpop.f32.mrb[0].mxu0
  %v1132 = vadd.f32 %v163, %v1131
  %v1133 = vpop.f32.mrb[0].mxu0
  %v1134 = vadd.f32 %v167, %v1133
  %1135 = vmatprep.mubr.f32.mxu0 0.0
  %1136 = vmatmul.mubr.f32.gmra.mrb[0].mxu0 %v430
  %v1137 = vpop.f32.mrb[0].mxu0
  %v1138 = vadd.f32 %v163, %v1137
  %v1139 = vpop.f32.mrb[0].mxu0
  %v1140 = vadd.f32 %v167, %v1139
  %1141 = vmatprep.mubr.f32.mxu0 0.0
  %1142 = vmatmul.mubr.f32.gmra.mrb[0].mxu0 %v433
  %v1143 = vpop.f32.mrb[0].mxu0
  %v1144 = vadd.f32 %v163, %v1143
  %v1145 = vpop.f32.mrb[0].mxu0
  %v1146 = vadd.f32 %v167, %v1145
  %1147 = vmatprep.mubr.f32.mxu0 0.0
  %1148 = vmatmul.mubr.f32.gmra.mrb[0].mxu0 %v436
  %v1149 = vpop.f32.mrb[0].mxu0
  %v1150 = vadd.f32 %v163, %v1149
  %v1151 = vpop.f32.mrb[0].mxu0
  %v1152 = vadd.f32 %v167, %v1151
  %1153 = vmatprep.mubr.f32.mxu0 0.0
  %1154 = vmatmul.mubr.f32.gmra.mrb[0].mxu0 %v439
  %v1155 = vpop.f32.mrb[0].mxu0
  %v1156 = vadd.f32 %v163, %v1155
  %v1157 = vpop.f32.mrb[0].mxu0
  %v1158 = vadd.f32 %v167, %v1157
  %1159 = vmatprep.mubr.f32.mxu0 0.0
  %1160 = vmatmul.mubr.f32.gmra.mrb[0].mxu0 %v442
  %v1161 = vpop.f32.mrb[0].mxu0
  %v1162 = vadd.f32 %v163, %v1161
  %v1163 = vpop.f32.mrb[0].mxu0
  %v1164 = vadd.f32 %v167, %v1163
  %1165 = vmatprep.mubr.f32.mxu0 0.0
  %1166 = vmatmul.mubr.f32.gmra.mrb[0].mxu0 %v445
  %v1167 = vpop.f32.mrb[0].mxu0
  %v1168 = vadd.f32 %v163, %v1167
  %v1169 = vpop.f32.mrb[0].mxu0
  %v1170 = vadd.f32 %v167, %v1169
  %1171 = vmatprep.mubr.f32.mxu0 0.0
  %1172 = vmatmul.mubr.f32.gmra.mrb[0].mxu0 %v448
  %v1173 = vpop.f32.mrb[0].mxu0
  %v1174 = vadd.f32 %v163, %v1173
  %v1175 = vpop.f32.mrb[0].mxu0
  %v1176 = vadd.f32 %v167, %v1175
  %1177 = vmatprep.mubr.f32.mxu0 0.0
  %1178 = vmatmul.mubr.f32.gmra.mrb[0].mxu0 %v451
  %v1179 = vpop.f32.mrb[0].mxu0
  %v1180 = vadd.f32 %v163, %v1179
  %v1181 = vpop.f32.mrb[0].mxu0
  %v1182 = vadd.f32 %v167, %v1181
  %1183 = vmatprep.mubr.f32.mxu0 0.0
  %1184 = vmatmul.mubr.f32.gmra.mrb[0].mxu0 %v454
  %v1185 = vpop.f32.mrb[0].mxu0
  %v1186 = vadd.f32 %v163, %v1185
  %v1187 = vpop.f32.mrb[0].mxu0
  %v1188 = vadd.f32 %v167, %v1187
  %1189 = vmatprep.mubr.f32.mxu0 0.0
  %1190 = vmatmul.mubr.f32.gmra.mrb[0].mxu0 %v457
  %v1191 = vpop.f32.mrb[0].mxu0
  %v1192 = vadd.f32 %v163, %v1191
  %v1193 = vpop.f32.mrb[0].mxu0
  %v1194 = vadd.f32 %v167, %v1193
  %1195 = vmatprep.mubr.f32.mxu0 0.0
  %1196 = vmatmul.mubr.f32.gmra.mrb[0].mxu0 %v460
  %v1197 = vpop.f32.mrb[0].mxu0
  %v1198 = vadd.f32 %v163, %v1197
  %v1199 = vpop.f32.mrb[0].mxu0
  %v1200 = vadd.f32 %v167, %v1199
  %1201 = vmatprep.mubr.f32.mxu0 0.0
  %1202 = vmatmul.mubr.f32.gmra.mrb[0].mxu0 %v463
  %v1203 = vpop.f32.mrb[0].mxu0
  %v1204 = vadd.f32 %v163, %v1203
  %v1205 = vpop.f32.mrb[0].mxu0
  %v1206 = vadd.f32 %v167, %v1205
  %1207 = vmatprep.mubr.f32.mxu0 0.0
  %1208 = vmatmul.mubr.f32.gmra.mrb[0].mxu0 %v466
  %v1209 = vpop.f32.mrb[0].mxu0
  %v1210 = vadd.f32 %v163, %v1209
  %v1211 = vpop.f32.mrb[0].mxu0
  %v1212 = vadd.f32 %v167, %v1211
  %1213 = vmatprep.mubr.f32.mxu0 0.0
  %1214 = vmatmul.mubr.f32.gmra.mrb[0].mxu0 %v469
  %v1215 = vpop.f32.mrb[0].mxu0
  %v1216 = vadd.f32 %v163, %v1215
  %v1217 = vpop.f32.mrb[0].mxu0
  %v1218 = vadd.f32 %v167, %v1217
  %1219 = vmatprep.mubr.f32.mxu0 0.0
  %1220 = vmatmul.mubr.f32.gmra.mrb[0].mxu0 %v472
  %v1221 = vpop.f32.mrb[0].mxu0
  %v1222 = vadd.f32 %v163, %v1221
  %v1223 = vpop.f32.mrb[0].mxu0
  %v1224 = vadd.f32 %v167, %v1223
  %1225 = vmatprep.mubr.f32.mxu0 0.0
  %1226 = vmatmul.mubr.f32.gmra.mrb[0].mxu0 %v475
  %v1227 = vpop.f32.mrb[0].mxu0
  %v1228 = vadd.f32 %v163, %v1227
  %v1229 = vpop.f32.mrb[0].mxu0
  %v1230 = vadd.f32 %v167, %v1229
  %1231 = vmatprep.mubr.f32.mxu0 0.0
  %1232 = vmatmul.mubr.f32.gmra.mrb[0].mxu0 %v478
  %v1233 = vpop.f32.mrb[0].mxu0
  %v1234 = vadd.f32 %v163, %v1233
  %v1235 = vpop.f32.mrb[0].mxu0
  %v1236 = vadd.f32 %v167, %v1235
  %1237 = vmatprep.mubr.f32.mxu0 0.0
  %1238 = vmatmul.mubr.f32.gmra.mrb[0].mxu0 %v481
  %v1239 = vpop.f32.mrb[0].mxu0
  %v1240 = vadd.f32 %v163, %v1239
  %v1241 = vpop.f32.mrb[0].mxu0
  %v1242 = vadd.f32 %v167, %v1241
  %1243 = vmatprep.mubr.f32.mxu0 0.0
  %1244 = vmatmul.mubr.f32.gmra.mrb[0].mxu0 %v484
  %v1245 = vpop.f32.mrb[0].mxu0
  %v1246 = vadd.f32 %v163, %v1245
  %v1247 = vpop.f32.mrb[0].mxu0
  %v1248 = vadd.f32 %v167, %v1247
  %1249 = vmatprep.mubr.f32.mxu0 0.0
  %1250 = vmatmul.mubr.f32.gmra.mrb[0].mxu0 %v487
  %v1251 = vpop.f32.mrb[0].mxu0
  %v1252 = vadd.f32 %v163, %v1251
  %v1253 = vpop.f32.mrb[0].mxu0
  %v1254 = vadd.f32 %v167, %v1253
  %1255 = vmatprep.mubr.f32.mxu0 0.0
  %1256 = vmatmul.mubr.f32.gmra.mrb[0].mxu0 %v490
  %v1257 = vpop.f32.mrb[0].mxu0
  %v1258 = vadd.f32 %v163, %v1257
  %v1259 = vpop.f32.mrb[0].mxu0
  %v1260 = vadd.f32 %v167, %v1259
  %1261 = vmatprep.mubr.f32.mxu0 0.0
  %1262 = vmatmul.mubr.f32.gmra.mrb[0].mxu0 %v493
  %v1263 = vpop.f32.mrb[0].mxu0
  %v1264 = vadd.f32 %v163, %v1263
  %v1265 = vpop.f32.mrb[0].mxu0
  %v1266 = vadd.f32 %v167, %v1265
  %1267 = vmatprep.mubr.f32.mxu0 0.0
  %1268 = vmatmul.mubr.f32.gmra.mrb[0].mxu0 %v496
  %v1269 = vpop.f32.mrb[0].mxu0
  %v1270 = vadd.f32 %v163, %v1269
  %v1271 = vpop.f32.mrb[0].mxu0
  %v1272 = vadd.f32 %v167, %v1271
  %1273 = vmatprep.mubr.f32.mxu0 0.0
  %1274 = vmatmul.mubr.f32.gmra.mrb[0].mxu0 %v499
  %v1275 = vpop.f32.mrb[0].mxu0
  %v1276 = vadd.f32 %v163, %v1275
  %v1277 = vpop.f32.mrb[0].mxu0
  %v1278 = vadd.f32 %v167, %v1277
  %1279 = vmatprep.mubr.f32.mxu0 0.0
  %1280 = vmatmul.mubr.f32.gmra.mrb[0].mxu0 %v502
  %v1281 = vpop.f32.mrb[0].mxu0
  %v1282 = vadd.f32 %v163, %v1281
  %v1283 = vpop.f32.mrb[0].mxu0
  %v1284 = vadd.f32 %v167, %v1283
  %1285 = vmatprep.mubr.f32.mxu0 0.0
  %1286 = vmatmul.mubr.f32.gmra.mrb[0].mxu0 %v505
  %v1287 = vpop.f32.mrb[0].mxu0
  %v1288 = vadd.f32 %v163, %v1287
  %v1289 = vpop.f32.mrb[0].mxu0
  %v1290 = vadd.f32 %v167, %v1289
  %1291 = vmatprep.mubr.f32.mxu0 0.0
  %1292 = vmatmul.mubr.f32.gmra.mrb[0].mxu0 %v508
  %v1293 = vpop.f32.mrb[0].mxu0
  %v1294 = vadd.f32 %v163, %v1293
  %v1295 = vpop.f32.mrb[0].mxu0
  %v1296 = vadd.f32 %v167, %v1295
  %1297 = vmatprep.mubr.f32.mxu0 0.0
  %1298 = vmatmul.mubr.f32.gmra.mrb[0].mxu0 %v511
  %v1299 = vpop.f32.mrb[0].mxu0
  %v1300 = vadd.f32 %v163, %v1299
  %v1301 = vpop.f32.mrb[0].mxu0
  %v1302 = vadd.f32 %v167, %v1301
  %1303 = vmatprep.mubr.f32.mxu0 0.0
  %1304 = vmatmul.mubr.f32.gmra.mrb[0].mxu0 %v514
  %v1305 = vpop.f32.mrb[0].mxu0
  %v1306 = vadd.f32 %v163, %v1305
  %v1307 = vpop.f32.mrb[0].mxu0
  %v1308 = vadd.f32 %v167, %v1307
  %1309 = vmatprep.mubr.f32.mxu0 0.0
  %1310 = vmatmul.mubr.f32.gmra.mrb[0].mxu0 %v517
  %v1311 = vpop.f32.mrb[0].mxu0
  %v1312 = vadd.f32 %v163, %v1311
  %v1313 = vpop.f32.mrb[0].mxu0
  %v1314 = vadd.f32 %v167, %v1313
  %1315 = vmatprep.mubr.f32.mxu0 0.0
  %1316 = vmatmul.mubr.f32.gmra.mrb[0].mxu0 %v520
  %v1317 = vpop.f32.mrb[0].mxu0
  %v1318 = vadd.f32 %v163, %v1317
  %v1319 = vpop.f32.mrb[0].mxu0
  %v1320 = vadd.f32 %v167, %v1319
  %1321 = vmatprep.mubr.f32.mxu0 0.0
  %1322 = vmatmul.mubr.f32.gmra.mrb[0].mxu0 %v523
  %v1323 = vpop.f32.mrb[0].mxu0
  %v1324 = vadd.f32 %v163, %v1323
  %v1325 = vpop.f32.mrb[0].mxu0
  %v1326 = vadd.f32 %v167, %v1325
  %1327 = vmatprep.mubr.f32.mxu0 0.0
  %1328 = vmatmul.mubr.f32.gmra.mrb[0].mxu0 %v526
  %v1329 = vpop.f32.mrb[0].mxu0
  %v1330 = vadd.f32 %v163, %v1329
  %v1331 = vpop.f32.mrb[0].mxu0
  %v1332 = vadd.f32 %v167, %v1331
  %1333 = vmatprep.mubr.f32.mxu0 0.0
  %1334 = vmatmul.mubr.f32.gmra.mrb[0].mxu0 %v529
  %v1335 = vpop.f32.mrb[0].mxu0
  %v1336 = vadd.f32 %v163, %v1335
  %v1337 = vpop.f32.mrb[0].mxu0
  %v1338 = vadd.f32 %v167, %v1337
  %1339 = vmatprep.mubr.f32.mxu0 0.0
  %1340 = vmatmul.mubr.f32.gmra.mrb[0].mxu0 %v532
  %v1341 = vpop.f32.mrb[0].mxu0
  %v1342 = vadd.f32 %v163, %v1341
  %v1343 = vpop.f32.mrb[0].mxu0
  %v1344 = vadd.f32 %v167, %v1343
  %1345 = vmatprep.mubr.f32.mxu0 0.0
  %1346 = vmatmul.mubr.f32.gmra.mrb[0].mxu0 %v535
  %v1347 = vpop.f32.mrb[0].mxu0
  %v1348 = vadd.f32 %v163, %v1347
  %v1349 = vpop.f32.mrb[0].mxu0
  %v1350 = vadd.f32 %v167, %v1349
  %1351 = vmatprep.mubr.f32.mxu0 0.0
  %1352 = vmatmul.mubr.f32.gmra.mrb[0].mxu0 %v538
  %v1353 = vpop.f32.mrb[0].mxu0
  %v1354 = vadd.f32 %v163, %v1353
  %v1355 = vpop.f32.mrb[0].mxu0
  %v1356 = vadd.f32 %v167, %v1355
  %1357 = vmatprep.mubr.f32.mxu0 0.0
  %1358 = vmatmul.mubr.f32.gmra.mrb[0].mxu0 %v541
  %v1359 = vpop.f32.mrb[0].mxu0
  %v1360 = vadd.f32 %v163, %v1359
  %v1361 = vpop.f32.mrb[0].mxu0
  %v1362 = vadd.f32 %v167, %v1361
  %1363 = vmatprep.mubr.f32.mxu0 0.0
  %1364 = vmatmul.mubr.f32.gmra.mrb[0].mxu0 %v544
  %v1365 = vpop.f32.mrb[0].mxu0
  %v1366 = vadd.f32 %v163, %v1365
  %v1367 = vpop.f32.mrb[0].mxu0
  %v1368 = vadd.f32 %v167, %v1367
  %1369 = vmatprep.mubr.f32.mxu0 0.0
  %1370 = vmatmul.mubr.f32.gmra.mrb[0].mxu0 %v547
  %v1371 = vpop.f32.mrb[0].mxu0
  %v1372 = vadd.f32 %v163, %v1371
  %v1373 = vpop.f32.mrb[0].mxu0
  %v1374 = vadd.f32 %v167, %v1373
  %1375 = vmatprep.mubr.f32.mxu0 0.0
  %1376 = vmatmul.mubr.f32.gmra.mrb[0].mxu0 %v550
  %v1377 = vpop.f32.mrb[0].mxu0
  %v1378 = vadd.f32 %v163, %v1377
  %v1379 = vpop.f32.mrb[0].mxu0
  %v1380 = vadd.f32 %v167, %v1379
  %1381 = vmatprep.mubr.f32.mxu0 0.0
  %1382 = vmatmul.mubr.f32.gmra.mrb[0].mxu0 %v553
  %v1383 = vpop.f32.mrb[0].mxu0
  %v1384 = vadd.f32 %v163, %v1383
  %v1385 = vpop.f32.mrb[0].mxu0
  %v1386 = vadd.f32 %v167, %v1385
  %1387 = vdwg.mxu0
  %v1388 = vmax.f32 %v622, 0.0
  %v1389 = vmax.f32 %v624, 0.0
  %v1390 = vmax.f32 %v628, 0.0
  %v1391 = vmax.f32 %v630, 0.0
  %v1392 = vmax.f32 %v634, 0.0
  %v1393 = vmax.f32 %v636, 0.0
  %v1394 = vmax.f32 %v640, 0.0
  %v1395 = vmax.f32 %v642, 0.0
  %v1396 = vmax.f32 %v646, 0.0
  %v1397 = vmax.f32 %v648, 0.0
  %v1398 = vmax.f32 %v652, 0.0
  %v1399 = vmax.f32 %v654, 0.0
  %v1400 = vmax.f32 %v658, 0.0
  %v1401 = vmax.f32 %v660, 0.0
  %v1402 = vmax.f32 %v664, 0.0
  %v1403 = vmax.f32 %v666, 0.0
  %v1404 = vmax.f32 %v670, 0.0
  %v1405 = vmax.f32 %v672, 0.0
  %v1406 = vmax.f32 %v676, 0.0
  %v1407 = vmax.f32 %v678, 0.0
  %v1408 = vmax.f32 %v682, 0.0
  %v1409 = vmax.f32 %v684, 0.0
  %v1410 = vmax.f32 %v688, 0.0
  %v1411 = vmax.f32 %v690, 0.0
  %v1412 = vmax.f32 %v694, 0.0
  %v1413 = vmax.f32 %v696, 0.0
  %v1414 = vmax.f32 %v700, 0.0
  %v1415 = vmax.f32 %v702, 0.0
  %v1416 = vmax.f32 %v706, 0.0
  %v1417 = vmax.f32 %v708, 0.0
  %v1418 = vmax.f32 %v712, 0.0
  %v1419 = vmax.f32 %v714, 0.0
  %v1420 = vmax.f32 %v718, 0.0
  %v1421 = vmax.f32 %v720, 0.0
  %v1422 = vmax.f32 %v724, 0.0
  %v1423 = vmax.f32 %v726, 0.0
  %v1424 = vmax.f32 %v730, 0.0
  %v1425 = vmax.f32 %v732, 0.0
  %v1426 = vmax.f32 %v736, 0.0
  %v1427 = vmax.f32 %v738, 0.0
  %v1428 = vmax.f32 %v742, 0.0
  %v1429 = vmax.f32 %v744, 0.0
  %v1430 = vmax.f32 %v748, 0.0
  %v1431 = vmax.f32 %v750, 0.0
  %v1432 = vmax.f32 %v754, 0.0
  %v1433 = vmax.f32 %v756, 0.0
  %v1434 = vmax.f32 %v760, 0.0
  %v1435 = vmax.f32 %v762, 0.0
  %v1436 = vmax.f32 %v766, 0.0
  %v1437 = vmax.f32 %v768, 0.0
  %v1438 = vmax.f32 %v772, 0.0
  %v1439 = vmax.f32 %v774, 0.0
  %v1440 = vmax.f32 %v778, 0.0
  %v1441 = vmax.f32 %v780, 0.0
  %v1442 = vmax.f32 %v784, 0.0
  %v1443 = vmax.f32 %v786, 0.0
  %v1444 = vmax.f32 %v790, 0.0
  %v1445 = vmax.f32 %v792, 0.0
  %v1446 = vmax.f32 %v796, 0.0
  %v1447 = vmax.f32 %v798, 0.0
  %v1448 = vmax.f32 %v802, 0.0
  %v1449 = vmax.f32 %v804, 0.0
  %v1450 = vmax.f32 %v808, 0.0
  %v1451 = vmax.f32 %v810, 0.0
  %v1452 = vmax.f32 %v814, 0.0
  %v1453 = vmax.f32 %v816, 0.0
  %v1454 = vmax.f32 %v820, 0.0
  %v1455 = vmax.f32 %v822, 0.0
  %v1456 = vmax.f32 %v826, 0.0
  %v1457 = vmax.f32 %v828, 0.0
  %v1458 = vmax.f32 %v832, 0.0
  %v1459 = vmax.f32 %v834, 0.0
  %v1460 = vmax.f32 %v838, 0.0
  %v1461 = vmax.f32 %v840, 0.0
  %v1462 = vmax.f32 %v844, 0.0
  %v1463 = vmax.f32 %v846, 0.0
  %v1464 = vmax.f32 %v850, 0.0
  %v1465 = vmax.f32 %v852, 0.0
  %v1466 = vmax.f32 %v856, 0.0
  %v1467 = vmax.f32 %v858, 0.0
  %v1468 = vmax.f32 %v862, 0.0
  %v1469 = vmax.f32 %v864, 0.0
  %v1470 = vmax.f32 %v868, 0.0
  %v1471 = vmax.f32 %v870, 0.0
  %v1472 = vmax.f32 %v874, 0.0
  %v1473 = vmax.f32 %v876, 0.0
  %v1474 = vmax.f32 %v880, 0.0
  %v1475 = vmax.f32 %v882, 0.0
  %v1476 = vmax.f32 %v886, 0.0
  %v1477 = vmax.f32 %v888, 0.0
  %v1478 = vmax.f32 %v892, 0.0
  %v1479 = vmax.f32 %v894, 0.0
  %v1480 = vmax.f32 %v898, 0.0
  %v1481 = vmax.f32 %v900, 0.0
  %v1482 = vmax.f32 %v904, 0.0
  %v1483 = vmax.f32 %v906, 0.0
  %v1484 = vmax.f32 %v910, 0.0
  %v1485 = vmax.f32 %v912, 0.0
  %v1486 = vmax.f32 %v916, 0.0
  %v1487 = vmax.f32 %v918, 0.0
  %v1488 = vmax.f32 %v922, 0.0
  %v1489 = vmax.f32 %v924, 0.0
  %v1490 = vmax.f32 %v928, 0.0
  %v1491 = vmax.f32 %v930, 0.0
  %v1492 = vmax.f32 %v934, 0.0
  %v1493 = vmax.f32 %v936, 0.0
  %v1494 = vmax.f32 %v940, 0.0
  %v1495 = vmax.f32 %v942, 0.0
  %v1496 = vmax.f32 %v946, 0.0
  %v1497 = vmax.f32 %v948, 0.0
  %v1498 = vmax.f32 %v952, 0.0
  %v1499 = vmax.f32 %v954, 0.0
  %v1500 = vmax.f32 %v958, 0.0
  %v1501 = vmax.f32 %v960, 0.0
  %v1502 = vmax.f32 %v964, 0.0
  %v1503 = vmax.f32 %v966, 0.0
  %v1504 = vmax.f32 %v970, 0.0
  %v1505 = vmax.f32 %v972, 0.0
  %v1506 = vmax.f32 %v976, 0.0
  %v1507 = vmax.f32 %v978, 0.0
  %v1508 = vmax.f32 %v982, 0.0
  %v1509 = vmax.f32 %v984, 0.0
  %v1510 = vmax.f32 %v988, 0.0
  %v1511 = vmax.f32 %v990, 0.0
  %v1512 = vmax.f32 %v994, 0.0
  %v1513 = vmax.f32 %v996, 0.0
  %v1514 = vmax.f32 %v1000, 0.0
  %v1515 = vmax.f32 %v1002, 0.0
  %v1516 = vmax.f32 %v1006, 0.0
  %v1517 = vmax.f32 %v1008, 0.0
  %v1518 = vmax.f32 %v1012, 0.0
  %v1519 = vmax.f32 %v1014, 0.0
  %v1520 = vmax.f32 %v1018, 0.0
  %v1521 = vmax.f32 %v1020, 0.0
  %v1522 = vmax.f32 %v1024, 0.0
  %v1523 = vmax.f32 %v1026, 0.0
  %v1524 = vmax.f32 %v1030, 0.0
  %v1525 = vmax.f32 %v1032, 0.0
  %v1526 = vmax.f32 %v1036, 0.0
  %v1527 = vmax.f32 %v1038, 0.0
  %v1528 = vmax.f32 %v1042, 0.0
  %v1529 = vmax.f32 %v1044, 0.0
  %v1530 = vmax.f32 %v1048, 0.0
  %v1531 = vmax.f32 %v1050, 0.0
  %v1532 = vmax.f32 %v1054, 0.0
  %v1533 = vmax.f32 %v1056, 0.0
  %v1534 = vmax.f32 %v1060, 0.0
  %v1535 = vmax.f32 %v1062, 0.0
  %v1536 = vmax.f32 %v1066, 0.0
  %v1537 = vmax.f32 %v1068, 0.0
  %v1538 = vmax.f32 %v1072, 0.0
  %v1539 = vmax.f32 %v1074, 0.0
  %v1540 = vmax.f32 %v1078, 0.0
  %v1541 = vmax.f32 %v1080, 0.0
  %v1542 = vmax.f32 %v1084, 0.0
  %v1543 = vmax.f32 %v1086, 0.0
  %v1544 = vmax.f32 %v1090, 0.0
  %v1545 = vmax.f32 %v1092, 0.0
  %v1546 = vmax.f32 %v1096, 0.0
  %v1547 = vmax.f32 %v1098, 0.0
  %v1548 = vmax.f32 %v1102, 0.0
  %v1549 = vmax.f32 %v1104, 0.0
  %v1550 = vmax.f32 %v1108, 0.0
  %v1551 = vmax.f32 %v1110, 0.0
  %v1552 = vmax.f32 %v1114, 0.0
  %v1553 = vmax.f32 %v1116, 0.0
  %v1554 = vmax.f32 %v1120, 0.0
  %v1555 = vmax.f32 %v1122, 0.0
  %v1556 = vmax.f32 %v1126, 0.0
  %v1557 = vmax.f32 %v1128, 0.0
  %v1558 = vmax.f32 %v1132, 0.0
  %v1559 = vmax.f32 %v1134, 0.0
  %v1560 = vmax.f32 %v1138, 0.0
  %v1561 = vmax.f32 %v1140, 0.0
  %v1562 = vmax.f32 %v1144, 0.0
  %v1563 = vmax.f32 %v1146, 0.0
  %v1564 = vmax.f32 %v1150, 0.0
  %v1565 = vmax.f32 %v1152, 0.0
  %v1566 = vmax.f32 %v1156, 0.0
  %v1567 = vmax.f32 %v1158, 0.0
  %v1568 = vmax.f32 %v1162, 0.0
  %v1569 = vmax.f32 %v1164, 0.0
  %v1570 = vmax.f32 %v1168, 0.0
  %v1571 = vmax.f32 %v1170, 0.0
  %v1572 = vmax.f32 %v1174, 0.0
  %v1573 = vmax.f32 %v1176, 0.0
  %v1574 = vmax.f32 %v1180, 0.0
  %v1575 = vmax.f32 %v1182, 0.0
  %v1576 = vmax.f32 %v1186, 0.0
  %v1577 = vmax.f32 %v1188, 0.0
  %v1578 = vmax.f32 %v1192, 0.0
  %v1579 = vmax.f32 %v1194, 0.0
  %v1580 = vmax.f32 %v1198, 0.0
  %v1581 = vmax.f32 %v1200, 0.0
  %v1582 = vmax.f32 %v1204, 0.0
  %v1583 = vmax.f32 %v1206, 0.0
  %v1584 = vmax.f32 %v1210, 0.0
  %v1585 = vmax.f32 %v1212, 0.0
  %v1586 = vmax.f32 %v1216, 0.0
  %v1587 = vmax.f32 %v1218, 0.0
  %v1588 = vmax.f32 %v1222, 0.0
  %v1589 = vmax.f32 %v1224, 0.0
  %v1590 = vmax.f32 %v1228, 0.0
  %v1591 = vmax.f32 %v1230, 0.0
  %v1592 = vmax.f32 %v1234, 0.0
  %v1593 = vmax.f32 %v1236, 0.0
  %v1594 = vmax.f32 %v1240, 0.0
  %v1595 = vmax.f32 %v1242, 0.0
  %v1596 = vmax.f32 %v1246, 0.0
  %v1597 = vmax.f32 %v1248, 0.0
  %v1598 = vmax.f32 %v1252, 0.0
  %v1599 = vmax.f32 %v1254, 0.0
  %v1600 = vmax.f32 %v1258, 0.0
  %v1601 = vmax.f32 %v1260, 0.0
  %v1602 = vmax.f32 %v1264, 0.0
  %v1603 = vmax.f32 %v1266, 0.0
  %v1604 = vmax.f32 %v1270, 0.0
  %v1605 = vmax.f32 %v1272, 0.0
  %v1606 = vmax.f32 %v1276, 0.0
  %v1607 = vmax.f32 %v1278, 0.0
  %v1608 = vmax.f32 %v1282, 0.0
  %v1609 = vmax.f32 %v1284, 0.0
  %v1610 = vmax.f32 %v1288, 0.0
  %v1611 = vmax.f32 %v1290, 0.0
  %v1612 = vmax.f32 %v1294, 0.0
  %v1613 = vmax.f32 %v1296, 0.0
  %v1614 = vmax.f32 %v1300, 0.0
  %v1615 = vmax.f32 %v1302, 0.0
  %v1616 = vmax.f32 %v1306, 0.0
  %v1617 = vmax.f32 %v1308, 0.0
  %v1618 = vmax.f32 %v1312, 0.0
  %v1619 = vmax.f32 %v1314, 0.0
  %v1620 = vmax.f32 %v1318, 0.0
  %v1621 = vmax.f32 %v1320, 0.0
  %v1622 = vmax.f32 %v1324, 0.0
  %v1623 = vmax.f32 %v1326, 0.0
  %v1624 = vmax.f32 %v1330, 0.0
  %v1625 = vmax.f32 %v1332, 0.0
  %v1626 = vmax.f32 %v1336, 0.0
  %v1627 = vmax.f32 %v1338, 0.0
  %v1628 = vmax.f32 %v1342, 0.0
  %v1629 = vmax.f32 %v1344, 0.0
  %v1630 = vmax.f32 %v1348, 0.0
  %v1631 = vmax.f32 %v1350, 0.0
  %v1632 = vmax.f32 %v1354, 0.0
  %v1633 = vmax.f32 %v1356, 0.0
  %v1634 = vmax.f32 %v1360, 0.0
  %v1635 = vmax.f32 %v1362, 0.0
  %v1636 = vmax.f32 %v1366, 0.0
  %v1637 = vmax.f32 %v1368, 0.0
  %v1638 = vmax.f32 %v1372, 0.0
  %v1639 = vmax.f32 %v1374, 0.0
  %v1640 = vmax.f32 %v1378, 0.0
  %v1641 = vmax.f32 %v1380, 0.0
  %v1642 = vmax.f32 %v1384, 0.0
  %v1643 = vmax.f32 %v1386, 0.0
  %v1644 = vld [vmem:[%s3] sm:$0xff]
  %v1645 = vld [vmem:[%s3 + $0x8] sm:$0xff]
  %v1646 = vld [vmem:[%s3 + $0x10] sm:$0xff]
  %v1647 = vld [vmem:[%s3 + $0x18] sm:$0xff]
  %v1648 = vld [vmem:[%s3 + $0x20] sm:$0xff]
  %v1649 = vld [vmem:[%s3 + $0x28] sm:$0xff]
  %v1650 = vld [vmem:[%s3 + $0x30] sm:$0xff]
  %v1651 = vld [vmem:[%s3 + $0x38] sm:$0xff]
  %v1652 = vld [vmem:[%s3 + $0x40] sm:$0xff]
  %v1653 = vld [vmem:[%s3 + $0x48] sm:$0xff]
  %v1654 = vld [vmem:[%s3 + $0x50] sm:$0xff]
  %v1655 = vld [vmem:[%s3 + $0x58] sm:$0xff]
  %v1656 = vld [vmem:[%s3 + $0x60] sm:$0xff]
  %v1657 = vld [vmem:[%s3 + $0x68] sm:$0xff]
  %v1658 = vld [vmem:[%s3 + $0x70] sm:$0xff]
  %v1659 = vld [vmem:[%s3 + $0x78] sm:$0xff]
  %v1660 = vld [vmem:[%s3 + $0x80] sm:$0xff]
  %v1661 = vld [vmem:[%s3 + $0x88] sm:$0xff]
  %v1662 = vld [vmem:[%s3 + $0x90] sm:$0xff]
  %v1663 = vld [vmem:[%s3 + $0x98] sm:$0xff]
  %v1664 = vld [vmem:[%s3 + $0xa0] sm:$0xff]
  %v1665 = vld [vmem:[%s3 + $0xa8] sm:$0xff]
  %v1666 = vld [vmem:[%s3 + $0xb0] sm:$0xff]
  %v1667 = vld [vmem:[%s3 + $0xb8] sm:$0xff]
  %v1668 = vld [vmem:[%s3 + $0xc0] sm:$0xff]
  %v1669 = vld [vmem:[%s3 + $0xc8] sm:$0xff]
  %v1670 = vld [vmem:[%s3 + $0xd0] sm:$0xff]
  %v1671 = vld [vmem:[%s3 + $0xd8] sm:$0xff]
  %v1672 = vld [vmem:[%s3 + $0xe0] sm:$0xff]
  %v1673 = vld [vmem:[%s3 + $0xe8] sm:$0xff]
  %v1674 = vld [vmem:[%s3 + $0xf0] sm:$0xff]
  %v1675 = vld [vmem:[%s3 + $0xf8] sm:$0xff]
  %v1676 = vld [vmem:[%s3 + $0x100] sm:$0xff]
  %v1677 = vld [vmem:[%s3 + $0x108] sm:$0xff]
  %v1678 = vld [vmem:[%s3 + $0x110] sm:$0xff]
  %v1679 = vld [vmem:[%s3 + $0x118] sm:$0xff]
  %v1680 = vld [vmem:[%s3 + $0x120] sm:$0xff]
  %v1681 = vld [vmem:[%s3 + $0x128] sm:$0xff]
  %v1682 = vld [vmem:[%s3 + $0x130] sm:$0xff]
  %v1683 = vld [vmem:[%s3 + $0x138] sm:$0xff]
  %v1684 = vld [vmem:[%s3 + $0x140] sm:$0xff]
  %v1685 = vld [vmem:[%s3 + $0x148] sm:$0xff]
  %v1686 = vld [vmem:[%s3 + $0x150] sm:$0xff]
  %v1687 = vld [vmem:[%s3 + $0x158] sm:$0xff]
  %v1688 = vld [vmem:[%s3 + $0x160] sm:$0xff]
  %v1689 = vld [vmem:[%s3 + $0x168] sm:$0xff]
  %v1690 = vld [vmem:[%s3 + $0x170] sm:$0xff]
  %v1691 = vld [vmem:[%s3 + $0x178] sm:$0xff]
  %v1692 = vld [vmem:[%s3 + $0x180] sm:$0xff]
  %v1693 = vld [vmem:[%s3 + $0x188] sm:$0xff]
  %v1694 = vld [vmem:[%s3 + $0x190] sm:$0xff]
  %v1695 = vld [vmem:[%s3 + $0x198] sm:$0xff]
  %v1696 = vld [vmem:[%s3 + $0x1a0] sm:$0xff]
  %v1697 = vld [vmem:[%s3 + $0x1a8] sm:$0xff]
  %v1698 = vld [vmem:[%s3 + $0x1b0] sm:$0xff]
  %v1699 = vld [vmem:[%s3 + $0x1b8] sm:$0xff]
  %v1700 = vld [vmem:[%s3 + $0x1c0] sm:$0xff]
  %v1701 = vld [vmem:[%s3 + $0x1c8] sm:$0xff]
  %v1702 = vld [vmem:[%s3 + $0x1d0] sm:$0xff]
  %v1703 = vld [vmem:[%s3 + $0x1d8] sm:$0xff]
  %v1704 = vld [vmem:[%s3 + $0x1e0] sm:$0xff]
  %v1705 = vld [vmem:[%s3 + $0x1e8] sm:$0xff]
  %v1706 = vld [vmem:[%s3 + $0x1f0] sm:$0xff]
  %v1707 = vld [vmem:[%s3 + $0x1f8] sm:$0xff]
  %v1708 = vld [vmem:[%s4] sm:$0x3]
  %v1710 = vlaneseq
  %v1711 = vshrl.u32 %v1710, 7
  %v1712 = vsub.s32 0, %v1711
  %v1713 = vrot.slane %v1708, %v1712
  %v1714 = vlaneseq
  %v1715 = vshrl.u32 %v1714, 7
  %v1716 = vsub.s32 1, %v1715
  %v1717 = vrot.slane %v1708, %v1716
  %1720 = vmatprep.subr.mxu0 %v1645
  %1721 = vmatpush1.msra.mxu0 %v1644
  %1722 = vmatprep.subr.mxu0 %v1647
  %1723 = vmatpush1.msra.mxu0 %v1646
  %1724 = vmatprep.subr.mxu0 %v1649
  %1725 = vmatpush1.msra.mxu0 %v1648
  %1726 = vmatprep.subr.mxu0 %v1651
  %1727 = vmatpush1.msra.mxu0 %v1650
  %1728 = vmatprep.subr.mxu0 %v1653
  %1729 = vmatpush1.msra.mxu0 %v1652
  %1730 = vmatprep.subr.mxu0 %v1655
  %1731 = vmatpush1.msra.mxu0 %v1654
  %1732 = vmatprep.subr.mxu0 %v1657
  %1733 = vmatpush1.msra.mxu0 %v1656
  %1734 = vmatprep.subr.mxu0 %v1659
  %1735 = vmatpush1.msra.mxu0 %v1658
  %1736 = vmatprep.subr.mxu0 %v1661
  %1737 = vmatpush1.msra.mxu0 %v1660
  %1738 = vmatprep.subr.mxu0 %v1663
  %1739 = vmatpush1.msra.mxu0 %v1662
  %1740 = vmatprep.subr.mxu0 %v1665
  %1741 = vmatpush1.msra.mxu0 %v1664
  %1742 = vmatprep.subr.mxu0 %v1667
  %1743 = vmatpush1.msra.mxu0 %v1666
  %1744 = vmatprep.subr.mxu0 %v1669
  %1745 = vmatpush1.msra.mxu0 %v1668
  %1746 = vmatprep.subr.mxu0 %v1671
  %1747 = vmatpush1.msra.mxu0 %v1670
  %1748 = vmatprep.subr.mxu0 %v1673
  %1749 = vmatpush1.msra.mxu0 %v1672
  %1750 = vmatprep.subr.mxu0 %v1675
  %1751 = vmatpush1.msra.mxu0 %v1674
  %1752 = vmatprep.subr.mxu0 %v1677
  %1753 = vmatpush1.msra.mxu0 %v1676
  %1754 = vmatprep.subr.mxu0 %v1679
  %1755 = vmatpush1.msra.mxu0 %v1678
  %1756 = vmatprep.subr.mxu0 %v1681
  %1757 = vmatpush1.msra.mxu0 %v1680
  %1758 = vmatprep.subr.mxu0 %v1683
  %1759 = vmatpush1.msra.mxu0 %v1682
  %1760 = vmatprep.subr.mxu0 %v1685
  %1761 = vmatpush1.msra.mxu0 %v1684
  %1762 = vmatprep.subr.mxu0 %v1687
  %1763 = vmatpush1.msra.mxu0 %v1686
  %1764 = vmatprep.subr.mxu0 %v1689
  %1765 = vmatpush1.msra.mxu0 %v1688
  %1766 = vmatprep.subr.mxu0 %v1691
  %1767 = vmatpush1.msra.mxu0 %v1690
  %1768 = vmatprep.subr.mxu0 %v1693
  %1769 = vmatpush1.msra.mxu0 %v1692
  %1770 = vmatprep.subr.mxu0 %v1695
  %1771 = vmatpush1.msra.mxu0 %v1694
  %1772 = vmatprep.subr.mxu0 %v1697
  %1773 = vmatpush1.msra.mxu0 %v1696
  %1774 = vmatprep.subr.mxu0 %v1699
  %1775 = vmatpush1.msra.mxu0 %v1698
  %1776 = vmatprep.subr.mxu0 %v1701
  %1777 = vmatpush1.msra.mxu0 %v1700
  %1778 = vmatprep.subr.mxu0 %v1703
  %1779 = vmatpush1.msra.mxu0 %v1702
  %1780 = vmatprep.subr.mxu0 %v1705
  %1781 = vmatpush1.msra.mxu0 %v1704
  %1782 = vmatprep.subr.mxu0 %v1707
  %1783 = vmatpush1.msra.mxu0 %v1706
  %1784 = vmatprep.mubr.f32.mxu0 %v1389
  %1785 = vmatmul.mubr.f32.gmra.mrb[0].mxu0 %v1388
  %v1786 = vpop.f32.mrb[0].mxu0
  %v1787 = vadd.f32 %v1713, %v1786
  %v1788 = vpop.f32.mrb[0].mxu0
  %v1789 = vadd.f32 %v1717, %v1788
  %1790 = vmatprep.mubr.f32.mxu0 %v1391
  %1791 = vmatmul.mubr.f32.gmra.mrb[0].mxu0 %v1390
  %v1792 = vpop.f32.mrb[0].mxu0
  %v1793 = vadd.f32 %v1713, %v1792
  %v1794 = vpop.f32.mrb[0].mxu0
  %v1795 = vadd.f32 %v1717, %v1794
  %1796 = vmatprep.mubr.f32.mxu0 %v1393
  %1797 = vmatmul.mubr.f32.gmra.mrb[0].mxu0 %v1392
  %v1798 = vpop.f32.mrb[0].mxu0
  %v1799 = vadd.f32 %v1713, %v1798
  %v1800 = vpop.f32.mrb[0].mxu0
  %v1801 = vadd.f32 %v1717, %v1800
  %1802 = vmatprep.mubr.f32.mxu0 %v1395
  %1803 = vmatmul.mubr.f32.gmra.mrb[0].mxu0 %v1394
  %v1804 = vpop.f32.mrb[0].mxu0
  %v1805 = vadd.f32 %v1713, %v1804
  %v1806 = vpop.f32.mrb[0].mxu0
  %v1807 = vadd.f32 %v1717, %v1806
  %1808 = vmatprep.mubr.f32.mxu0 %v1397
  %1809 = vmatmul.mubr.f32.gmra.mrb[0].mxu0 %v1396
  %v1810 = vpop.f32.mrb[0].mxu0
  %v1811 = vadd.f32 %v1713, %v1810
  %v1812 = vpop.f32.mrb[0].mxu0
  %v1813 = vadd.f32 %v1717, %v1812
  %1814 = vmatprep.mubr.f32.mxu0 %v1399
  %1815 = vmatmul.mubr.f32.gmra.mrb[0].mxu0 %v1398
  %v1816 = vpop.f32.mrb[0].mxu0
  %v1817 = vadd.f32 %v1713, %v1816
  %v1818 = vpop.f32.mrb[0].mxu0
  %v1819 = vadd.f32 %v1717, %v1818
  %1820 = vmatprep.mubr.f32.mxu0 %v1401
  %1821 = vmatmul.mubr.f32.gmra.mrb[0].mxu0 %v1400
  %v1822 = vpop.f32.mrb[0].mxu0
  %v1823 = vadd.f32 %v1713, %v1822
  %v1824 = vpop.f32.mrb[0].mxu0
  %v1825 = vadd.f32 %v1717, %v1824
  %1826 = vmatprep.mubr.f32.mxu0 %v1403
  %1827 = vmatmul.mubr.f32.gmra.mrb[0].mxu0 %v1402
  %v1828 = vpop.f32.mrb[0].mxu0
  %v1829 = vadd.f32 %v1713, %v1828
  %v1830 = vpop.f32.mrb[0].mxu0
  %v1831 = vadd.f32 %v1717, %v1830
  %1832 = vmatprep.mubr.f32.mxu0 %v1405
  %1833 = vmatmul.mubr.f32.gmra.mrb[0].mxu0 %v1404
  %v1834 = vpop.f32.mrb[0].mxu0
  %v1835 = vadd.f32 %v1713, %v1834
  %v1836 = vpop.f32.mrb[0].mxu0
  %v1837 = vadd.f32 %v1717, %v1836
  %1838 = vmatprep.mubr.f32.mxu0 %v1407
  %1839 = vmatmul.mubr.f32.gmra.mrb[0].mxu0 %v1406
  %v1840 = vpop.f32.mrb[0].mxu0
  %v1841 = vadd.f32 %v1713, %v1840
  %v1842 = vpop.f32.mrb[0].mxu0
  %v1843 = vadd.f32 %v1717, %v1842
  %1844 = vmatprep.mubr.f32.mxu0 %v1409
  %1845 = vmatmul.mubr.f32.gmra.mrb[0].mxu0 %v1408
  %v1846 = vpop.f32.mrb[0].mxu0
  %v1847 = vadd.f32 %v1713, %v1846
  %v1848 = vpop.f32.mrb[0].mxu0
  %v1849 = vadd.f32 %v1717, %v1848
  %1850 = vmatprep.mubr.f32.mxu0 %v1411
  %1851 = vmatmul.mubr.f32.gmra.mrb[0].mxu0 %v1410
  %v1852 = vpop.f32.mrb[0].mxu0
  %v1853 = vadd.f32 %v1713, %v1852
  %v1854 = vpop.f32.mrb[0].mxu0
  %v1855 = vadd.f32 %v1717, %v1854
  %1856 = vmatprep.mubr.f32.mxu0 %v1413
  %1857 = vmatmul.mubr.f32.gmra.mrb[0].mxu0 %v1412
  %v1858 = vpop.f32.mrb[0].mxu0
  %v1859 = vadd.f32 %v1713, %v1858
  %v1860 = vpop.f32.mrb[0].mxu0
  %v1861 = vadd.f32 %v1717, %v1860
  %1862 = vmatprep.mubr.f32.mxu0 %v1415
  %1863 = vmatmul.mubr.f32.gmra.mrb[0].mxu0 %v1414
  %v1864 = vpop.f32.mrb[0].mxu0
  %v1865 = vadd.f32 %v1713, %v1864
  %v1866 = vpop.f32.mrb[0].mxu0
  %v1867 = vadd.f32 %v1717, %v1866
  %1868 = vmatprep.mubr.f32.mxu0 %v1417
  %1869 = vmatmul.mubr.f32.gmra.mrb[0].mxu0 %v1416
  %v1870 = vpop.f32.mrb[0].mxu0
  %v1871 = vadd.f32 %v1713, %v1870
  %v1872 = vpop.f32.mrb[0].mxu0
  %v1873 = vadd.f32 %v1717, %v1872
  %1874 = vmatprep.mubr.f32.mxu0 %v1419
  %1875 = vmatmul.mubr.f32.gmra.mrb[0].mxu0 %v1418
  %v1876 = vpop.f32.mrb[0].mxu0
  %v1877 = vadd.f32 %v1713, %v1876
  %v1878 = vpop.f32.mrb[0].mxu0
  %v1879 = vadd.f32 %v1717, %v1878
  %1880 = vmatprep.mubr.f32.mxu0 %v1421
  %1881 = vmatmul.mubr.f32.gmra.mrb[0].mxu0 %v1420
  %v1882 = vpop.f32.mrb[0].mxu0
  %v1883 = vadd.f32 %v1713, %v1882
  %v1884 = vpop.f32.mrb[0].mxu0
  %v1885 = vadd.f32 %v1717, %v1884
  %1886 = vmatprep.mubr.f32.mxu0 %v1423
  %1887 = vmatmul.mubr.f32.gmra.mrb[0].mxu0 %v1422
  %v1888 = vpop.f32.mrb[0].mxu0
  %v1889 = vadd.f32 %v1713, %v1888
  %v1890 = vpop.f32.mrb[0].mxu0
  %v1891 = vadd.f32 %v1717, %v1890
  %1892 = vmatprep.mubr.f32.mxu0 %v1425
  %1893 = vmatmul.mubr.f32.gmra.mrb[0].mxu0 %v1424
  %v1894 = vpop.f32.mrb[0].mxu0
  %v1895 = vadd.f32 %v1713, %v1894
  %v1896 = vpop.f32.mrb[0].mxu0
  %v1897 = vadd.f32 %v1717, %v1896
  %1898 = vmatprep.mubr.f32.mxu0 %v1427
  %1899 = vmatmul.mubr.f32.gmra.mrb[0].mxu0 %v1426
  %v1900 = vpop.f32.mrb[0].mxu0
  %v1901 = vadd.f32 %v1713, %v1900
  %v1902 = vpop.f32.mrb[0].mxu0
  %v1903 = vadd.f32 %v1717, %v1902
  %1904 = vmatprep.mubr.f32.mxu0 %v1429
  %1905 = vmatmul.mubr.f32.gmra.mrb[0].mxu0 %v1428
  %v1906 = vpop.f32.mrb[0].mxu0
  %v1907 = vadd.f32 %v1713, %v1906
  %v1908 = vpop.f32.mrb[0].mxu0
  %v1909 = vadd.f32 %v1717, %v1908
  %1910 = vmatprep.mubr.f32.mxu0 %v1431
  %1911 = vmatmul.mubr.f32.gmra.mrb[0].mxu0 %v1430
  %v1912 = vpop.f32.mrb[0].mxu0
  %v1913 = vadd.f32 %v1713, %v1912
  %v1914 = vpop.f32.mrb[0].mxu0
  %v1915 = vadd.f32 %v1717, %v1914
  %1916 = vmatprep.mubr.f32.mxu0 %v1433
  %1917 = vmatmul.mubr.f32.gmra.mrb[0].mxu0 %v1432
  %v1918 = vpop.f32.mrb[0].mxu0
  %v1919 = vadd.f32 %v1713, %v1918
  %v1920 = vpop.f32.mrb[0].mxu0
  %v1921 = vadd.f32 %v1717, %v1920
  %1922 = vmatprep.mubr.f32.mxu0 %v1435
  %1923 = vmatmul.mubr.f32.gmra.mrb[0].mxu0 %v1434
  %v1924 = vpop.f32.mrb[0].mxu0
  %v1925 = vadd.f32 %v1713, %v1924
  %v1926 = vpop.f32.mrb[0].mxu0
  %v1927 = vadd.f32 %v1717, %v1926
  %1928 = vmatprep.mubr.f32.mxu0 %v1437
  %1929 = vmatmul.mubr.f32.gmra.mrb[0].mxu0 %v1436
  %v1930 = vpop.f32.mrb[0].mxu0
  %v1931 = vadd.f32 %v1713, %v1930
  %v1932 = vpop.f32.mrb[0].mxu0
  %v1933 = vadd.f32 %v1717, %v1932
  %1934 = vmatprep.mubr.f32.mxu0 %v1439
  %1935 = vmatmul.mubr.f32.gmra.mrb[0].mxu0 %v1438
  %v1936 = vpop.f32.mrb[0].mxu0
  %v1937 = vadd.f32 %v1713, %v1936
  %v1938 = vpop.f32.mrb[0].mxu0
  %v1939 = vadd.f32 %v1717, %v1938
  %1940 = vmatprep.mubr.f32.mxu0 %v1441
  %1941 = vmatmul.mubr.f32.gmra.mrb[0].mxu0 %v1440
  %v1942 = vpop.f32.mrb[0].mxu0
  %v1943 = vadd.f32 %v1713, %v1942
  %v1944 = vpop.f32.mrb[0].mxu0
  %v1945 = vadd.f32 %v1717, %v1944
  %1946 = vmatprep.mubr.f32.mxu0 %v1443
  %1947 = vmatmul.mubr.f32.gmra.mrb[0].mxu0 %v1442
  %v1948 = vpop.f32.mrb[0].mxu0
  %v1949 = vadd.f32 %v1713, %v1948
  %v1950 = vpop.f32.mrb[0].mxu0
  %v1951 = vadd.f32 %v1717, %v1950
  %1952 = vmatprep.mubr.f32.mxu0 %v1445
  %1953 = vmatmul.mubr.f32.gmra.mrb[0].mxu0 %v1444
  %v1954 = vpop.f32.mrb[0].mxu0
  %v1955 = vadd.f32 %v1713, %v1954
  %v1956 = vpop.f32.mrb[0].mxu0
  %v1957 = vadd.f32 %v1717, %v1956
  %1958 = vmatprep.mubr.f32.mxu0 %v1447
  %1959 = vmatmul.mubr.f32.gmra.mrb[0].mxu0 %v1446
  %v1960 = vpop.f32.mrb[0].mxu0
  %v1961 = vadd.f32 %v1713, %v1960
  %v1962 = vpop.f32.mrb[0].mxu0
  %v1963 = vadd.f32 %v1717, %v1962
  %1964 = vmatprep.mubr.f32.mxu0 %v1449
  %1965 = vmatmul.mubr.f32.gmra.mrb[0].mxu0 %v1448
  %v1966 = vpop.f32.mrb[0].mxu0
  %v1967 = vadd.f32 %v1713, %v1966
  %v1968 = vpop.f32.mrb[0].mxu0
  %v1969 = vadd.f32 %v1717, %v1968
  %1970 = vmatprep.mubr.f32.mxu0 %v1451
  %1971 = vmatmul.mubr.f32.gmra.mrb[0].mxu0 %v1450
  %v1972 = vpop.f32.mrb[0].mxu0
  %v1973 = vadd.f32 %v1713, %v1972
  %v1974 = vpop.f32.mrb[0].mxu0
  %v1975 = vadd.f32 %v1717, %v1974
  %1976 = vmatprep.mubr.f32.mxu0 %v1453
  %1977 = vmatmul.mubr.f32.gmra.mrb[0].mxu0 %v1452
  %v1978 = vpop.f32.mrb[0].mxu0
  %v1979 = vadd.f32 %v1713, %v1978
  %v1980 = vpop.f32.mrb[0].mxu0
  %v1981 = vadd.f32 %v1717, %v1980
  %1982 = vmatprep.mubr.f32.mxu0 %v1455
  %1983 = vmatmul.mubr.f32.gmra.mrb[0].mxu0 %v1454
  %v1984 = vpop.f32.mrb[0].mxu0
  %v1985 = vadd.f32 %v1713, %v1984
  %v1986 = vpop.f32.mrb[0].mxu0
  %v1987 = vadd.f32 %v1717, %v1986
  %1988 = vmatprep.mubr.f32.mxu0 %v1457
  %1989 = vmatmul.mubr.f32.gmra.mrb[0].mxu0 %v1456
  %v1990 = vpop.f32.mrb[0].mxu0
  %v1991 = vadd.f32 %v1713, %v1990
  %v1992 = vpop.f32.mrb[0].mxu0
  %v1993 = vadd.f32 %v1717, %v1992
  %1994 = vmatprep.mubr.f32.mxu0 %v1459
  %1995 = vmatmul.mubr.f32.gmra.mrb[0].mxu0 %v1458
  %v1996 = vpop.f32.mrb[0].mxu0
  %v1997 = vadd.f32 %v1713, %v1996
  %v1998 = vpop.f32.mrb[0].mxu0
  %v1999 = vadd.f32 %v1717, %v1998
  %2000 = vmatprep.mubr.f32.mxu0 %v1461
  %2001 = vmatmul.mubr.f32.gmra.mrb[0].mxu0 %v1460
  %v2002 = vpop.f32.mrb[0].mxu0
  %v2003 = vadd.f32 %v1713, %v2002
  %v2004 = vpop.f32.mrb[0].mxu0
  %v2005 = vadd.f32 %v1717, %v2004
  %2006 = vmatprep.mubr.f32.mxu0 %v1463
  %2007 = vmatmul.mubr.f32.gmra.mrb[0].mxu0 %v1462
  %v2008 = vpop.f32.mrb[0].mxu0
  %v2009 = vadd.f32 %v1713, %v2008
  %v2010 = vpop.f32.mrb[0].mxu0
  %v2011 = vadd.f32 %v1717, %v2010
  %2012 = vmatprep.mubr.f32.mxu0 %v1465
  %2013 = vmatmul.mubr.f32.gmra.mrb[0].mxu0 %v1464
  %v2014 = vpop.f32.mrb[0].mxu0
  %v2015 = vadd.f32 %v1713, %v2014
  %v2016 = vpop.f32.mrb[0].mxu0
  %v2017 = vadd.f32 %v1717, %v2016
  %2018 = vmatprep.mubr.f32.mxu0 %v1467
  %2019 = vmatmul.mubr.f32.gmra.mrb[0].mxu0 %v1466
  %v2020 = vpop.f32.mrb[0].mxu0
  %v2021 = vadd.f32 %v1713, %v2020
  %v2022 = vpop.f32.mrb[0].mxu0
  %v2023 = vadd.f32 %v1717, %v2022
  %2024 = vmatprep.mubr.f32.mxu0 %v1469
  %2025 = vmatmul.mubr.f32.gmra.mrb[0].mxu0 %v1468
  %v2026 = vpop.f32.mrb[0].mxu0
  %v2027 = vadd.f32 %v1713, %v2026
  %v2028 = vpop.f32.mrb[0].mxu0
  %v2029 = vadd.f32 %v1717, %v2028
  %2030 = vmatprep.mubr.f32.mxu0 %v1471
  %2031 = vmatmul.mubr.f32.gmra.mrb[0].mxu0 %v1470
  %v2032 = vpop.f32.mrb[0].mxu0
  %v2033 = vadd.f32 %v1713, %v2032
  %v2034 = vpop.f32.mrb[0].mxu0
  %v2035 = vadd.f32 %v1717, %v2034
  %2036 = vmatprep.mubr.f32.mxu0 %v1473
  %2037 = vmatmul.mubr.f32.gmra.mrb[0].mxu0 %v1472
  %v2038 = vpop.f32.mrb[0].mxu0
  %v2039 = vadd.f32 %v1713, %v2038
  %v2040 = vpop.f32.mrb[0].mxu0
  %v2041 = vadd.f32 %v1717, %v2040
  %2042 = vmatprep.mubr.f32.mxu0 %v1475
  %2043 = vmatmul.mubr.f32.gmra.mrb[0].mxu0 %v1474
  %v2044 = vpop.f32.mrb[0].mxu0
  %v2045 = vadd.f32 %v1713, %v2044
  %v2046 = vpop.f32.mrb[0].mxu0
  %v2047 = vadd.f32 %v1717, %v2046
  %2048 = vmatprep.mubr.f32.mxu0 %v1477
  %2049 = vmatmul.mubr.f32.gmra.mrb[0].mxu0 %v1476
  %v2050 = vpop.f32.mrb[0].mxu0
  %v2051 = vadd.f32 %v1713, %v2050
  %v2052 = vpop.f32.mrb[0].mxu0
  %v2053 = vadd.f32 %v1717, %v2052
  %2054 = vmatprep.mubr.f32.mxu0 %v1479
  %2055 = vmatmul.mubr.f32.gmra.mrb[0].mxu0 %v1478
  %v2056 = vpop.f32.mrb[0].mxu0
  %v2057 = vadd.f32 %v1713, %v2056
  %v2058 = vpop.f32.mrb[0].mxu0
  %v2059 = vadd.f32 %v1717, %v2058
  %2060 = vmatprep.mubr.f32.mxu0 %v1481
  %2061 = vmatmul.mubr.f32.gmra.mrb[0].mxu0 %v1480
  %v2062 = vpop.f32.mrb[0].mxu0
  %v2063 = vadd.f32 %v1713, %v2062
  %v2064 = vpop.f32.mrb[0].mxu0
  %v2065 = vadd.f32 %v1717, %v2064
  %2066 = vmatprep.mubr.f32.mxu0 %v1483
  %2067 = vmatmul.mubr.f32.gmra.mrb[0].mxu0 %v1482
  %v2068 = vpop.f32.mrb[0].mxu0
  %v2069 = vadd.f32 %v1713, %v2068
  %v2070 = vpop.f32.mrb[0].mxu0
  %v2071 = vadd.f32 %v1717, %v2070
  %2072 = vmatprep.mubr.f32.mxu0 %v1485
  %2073 = vmatmul.mubr.f32.gmra.mrb[0].mxu0 %v1484
  %v2074 = vpop.f32.mrb[0].mxu0
  %v2075 = vadd.f32 %v1713, %v2074
  %v2076 = vpop.f32.mrb[0].mxu0
  %v2077 = vadd.f32 %v1717, %v2076
  %2078 = vmatprep.mubr.f32.mxu0 %v1487
  %2079 = vmatmul.mubr.f32.gmra.mrb[0].mxu0 %v1486
  %v2080 = vpop.f32.mrb[0].mxu0
  %v2081 = vadd.f32 %v1713, %v2080
  %v2082 = vpop.f32.mrb[0].mxu0
  %v2083 = vadd.f32 %v1717, %v2082
  %2084 = vmatprep.mubr.f32.mxu0 %v1489
  %2085 = vmatmul.mubr.f32.gmra.mrb[0].mxu0 %v1488
  %v2086 = vpop.f32.mrb[0].mxu0
  %v2087 = vadd.f32 %v1713, %v2086
  %v2088 = vpop.f32.mrb[0].mxu0
  %v2089 = vadd.f32 %v1717, %v2088
  %2090 = vmatprep.mubr.f32.mxu0 %v1491
  %2091 = vmatmul.mubr.f32.gmra.mrb[0].mxu0 %v1490
  %v2092 = vpop.f32.mrb[0].mxu0
  %v2093 = vadd.f32 %v1713, %v2092
  %v2094 = vpop.f32.mrb[0].mxu0
  %v2095 = vadd.f32 %v1717, %v2094
  %2096 = vmatprep.mubr.f32.mxu0 %v1493
  %2097 = vmatmul.mubr.f32.gmra.mrb[0].mxu0 %v1492
  %v2098 = vpop.f32.mrb[0].mxu0
  %v2099 = vadd.f32 %v1713, %v2098
  %v2100 = vpop.f32.mrb[0].mxu0
  %v2101 = vadd.f32 %v1717, %v2100
  %2102 = vmatprep.mubr.f32.mxu0 %v1495
  %2103 = vmatmul.mubr.f32.gmra.mrb[0].mxu0 %v1494
  %v2104 = vpop.f32.mrb[0].mxu0
  %v2105 = vadd.f32 %v1713, %v2104
  %v2106 = vpop.f32.mrb[0].mxu0
  %v2107 = vadd.f32 %v1717, %v2106
  %2108 = vmatprep.mubr.f32.mxu0 %v1497
  %2109 = vmatmul.mubr.f32.gmra.mrb[0].mxu0 %v1496
  %v2110 = vpop.f32.mrb[0].mxu0
  %v2111 = vadd.f32 %v1713, %v2110
  %v2112 = vpop.f32.mrb[0].mxu0
  %v2113 = vadd.f32 %v1717, %v2112
  %2114 = vmatprep.mubr.f32.mxu0 %v1499
  %2115 = vmatmul.mubr.f32.gmra.mrb[0].mxu0 %v1498
  %v2116 = vpop.f32.mrb[0].mxu0
  %v2117 = vadd.f32 %v1713, %v2116
  %v2118 = vpop.f32.mrb[0].mxu0
  %v2119 = vadd.f32 %v1717, %v2118
  %2120 = vmatprep.mubr.f32.mxu0 %v1501
  %2121 = vmatmul.mubr.f32.gmra.mrb[0].mxu0 %v1500
  %v2122 = vpop.f32.mrb[0].mxu0
  %v2123 = vadd.f32 %v1713, %v2122
  %v2124 = vpop.f32.mrb[0].mxu0
  %v2125 = vadd.f32 %v1717, %v2124
  %2126 = vmatprep.mubr.f32.mxu0 %v1503
  %2127 = vmatmul.mubr.f32.gmra.mrb[0].mxu0 %v1502
  %v2128 = vpop.f32.mrb[0].mxu0
  %v2129 = vadd.f32 %v1713, %v2128
  %v2130 = vpop.f32.mrb[0].mxu0
  %v2131 = vadd.f32 %v1717, %v2130
  %2132 = vmatprep.mubr.f32.mxu0 %v1505
  %2133 = vmatmul.mubr.f32.gmra.mrb[0].mxu0 %v1504
  %v2134 = vpop.f32.mrb[0].mxu0
  %v2135 = vadd.f32 %v1713, %v2134
  %v2136 = vpop.f32.mrb[0].mxu0
  %v2137 = vadd.f32 %v1717, %v2136
  %2138 = vmatprep.mubr.f32.mxu0 %v1507
  %2139 = vmatmul.mubr.f32.gmra.mrb[0].mxu0 %v1506
  %v2140 = vpop.f32.mrb[0].mxu0
  %v2141 = vadd.f32 %v1713, %v2140
  %v2142 = vpop.f32.mrb[0].mxu0
  %v2143 = vadd.f32 %v1717, %v2142
  %2144 = vmatprep.mubr.f32.mxu0 %v1509
  %2145 = vmatmul.mubr.f32.gmra.mrb[0].mxu0 %v1508
  %v2146 = vpop.f32.mrb[0].mxu0
  %v2147 = vadd.f32 %v1713, %v2146
  %v2148 = vpop.f32.mrb[0].mxu0
  %v2149 = vadd.f32 %v1717, %v2148
  %2150 = vmatprep.mubr.f32.mxu0 %v1511
  %2151 = vmatmul.mubr.f32.gmra.mrb[0].mxu0 %v1510
  %v2152 = vpop.f32.mrb[0].mxu0
  %v2153 = vadd.f32 %v1713, %v2152
  %v2154 = vpop.f32.mrb[0].mxu0
  %v2155 = vadd.f32 %v1717, %v2154
  %2156 = vmatprep.mubr.f32.mxu0 %v1513
  %2157 = vmatmul.mubr.f32.gmra.mrb[0].mxu0 %v1512
  %v2158 = vpop.f32.mrb[0].mxu0
  %v2159 = vadd.f32 %v1713, %v2158
  %v2160 = vpop.f32.mrb[0].mxu0
  %v2161 = vadd.f32 %v1717, %v2160
  %2162 = vmatprep.mubr.f32.mxu0 %v1515
  %2163 = vmatmul.mubr.f32.gmra.mrb[0].mxu0 %v1514
  %v2164 = vpop.f32.mrb[0].mxu0
  %v2165 = vadd.f32 %v1713, %v2164
  %v2166 = vpop.f32.mrb[0].mxu0
  %v2167 = vadd.f32 %v1717, %v2166
  %2168 = vmatprep.mubr.f32.mxu0 %v1517
  %2169 = vmatmul.mubr.f32.gmra.mrb[0].mxu0 %v1516
  %v2170 = vpop.f32.mrb[0].mxu0
  %v2171 = vadd.f32 %v1713, %v2170
  %v2172 = vpop.f32.mrb[0].mxu0
  %v2173 = vadd.f32 %v1717, %v2172
  %2174 = vmatprep.mubr.f32.mxu0 %v1519
  %2175 = vmatmul.mubr.f32.gmra.mrb[0].mxu0 %v1518
  %v2176 = vpop.f32.mrb[0].mxu0
  %v2177 = vadd.f32 %v1713, %v2176
  %v2178 = vpop.f32.mrb[0].mxu0
  %v2179 = vadd.f32 %v1717, %v2178
  %2180 = vmatprep.mubr.f32.mxu0 %v1521
  %2181 = vmatmul.mubr.f32.gmra.mrb[0].mxu0 %v1520
  %v2182 = vpop.f32.mrb[0].mxu0
  %v2183 = vadd.f32 %v1713, %v2182
  %v2184 = vpop.f32.mrb[0].mxu0
  %v2185 = vadd.f32 %v1717, %v2184
  %2186 = vmatprep.mubr.f32.mxu0 %v1523
  %2187 = vmatmul.mubr.f32.gmra.mrb[0].mxu0 %v1522
  %v2188 = vpop.f32.mrb[0].mxu0
  %v2189 = vadd.f32 %v1713, %v2188
  %v2190 = vpop.f32.mrb[0].mxu0
  %v2191 = vadd.f32 %v1717, %v2190
  %2192 = vmatprep.mubr.f32.mxu0 %v1525
  %2193 = vmatmul.mubr.f32.gmra.mrb[0].mxu0 %v1524
  %v2194 = vpop.f32.mrb[0].mxu0
  %v2195 = vadd.f32 %v1713, %v2194
  %v2196 = vpop.f32.mrb[0].mxu0
  %v2197 = vadd.f32 %v1717, %v2196
  %2198 = vmatprep.mubr.f32.mxu0 %v1527
  %2199 = vmatmul.mubr.f32.gmra.mrb[0].mxu0 %v1526
  %v2200 = vpop.f32.mrb[0].mxu0
  %v2201 = vadd.f32 %v1713, %v2200
  %v2202 = vpop.f32.mrb[0].mxu0
  %v2203 = vadd.f32 %v1717, %v2202
  %2204 = vmatprep.mubr.f32.mxu0 %v1529
  %2205 = vmatmul.mubr.f32.gmra.mrb[0].mxu0 %v1528
  %v2206 = vpop.f32.mrb[0].mxu0
  %v2207 = vadd.f32 %v1713, %v2206
  %v2208 = vpop.f32.mrb[0].mxu0
  %v2209 = vadd.f32 %v1717, %v2208
  %2210 = vmatprep.mubr.f32.mxu0 %v1531
  %2211 = vmatmul.mubr.f32.gmra.mrb[0].mxu0 %v1530
  %v2212 = vpop.f32.mrb[0].mxu0
  %v2213 = vadd.f32 %v1713, %v2212
  %v2214 = vpop.f32.mrb[0].mxu0
  %v2215 = vadd.f32 %v1717, %v2214
  %2216 = vmatprep.mubr.f32.mxu0 %v1533
  %2217 = vmatmul.mubr.f32.gmra.mrb[0].mxu0 %v1532
  %v2218 = vpop.f32.mrb[0].mxu0
  %v2219 = vadd.f32 %v1713, %v2218
  %v2220 = vpop.f32.mrb[0].mxu0
  %v2221 = vadd.f32 %v1717, %v2220
  %2222 = vmatprep.mubr.f32.mxu0 %v1535
  %2223 = vmatmul.mubr.f32.gmra.mrb[0].mxu0 %v1534
  %v2224 = vpop.f32.mrb[0].mxu0
  %v2225 = vadd.f32 %v1713, %v2224
  %v2226 = vpop.f32.mrb[0].mxu0
  %v2227 = vadd.f32 %v1717, %v2226
  %2228 = vmatprep.mubr.f32.mxu0 %v1537
  %2229 = vmatmul.mubr.f32.gmra.mrb[0].mxu0 %v1536
  %v2230 = vpop.f32.mrb[0].mxu0
  %v2231 = vadd.f32 %v1713, %v2230
  %v2232 = vpop.f32.mrb[0].mxu0
  %v2233 = vadd.f32 %v1717, %v2232
  %2234 = vmatprep.mubr.f32.mxu0 %v1539
  %2235 = vmatmul.mubr.f32.gmra.mrb[0].mxu0 %v1538
  %v2236 = vpop.f32.mrb[0].mxu0
  %v2237 = vadd.f32 %v1713, %v2236
  %v2238 = vpop.f32.mrb[0].mxu0
  %v2239 = vadd.f32 %v1717, %v2238
  %2240 = vmatprep.mubr.f32.mxu0 %v1541
  %2241 = vmatmul.mubr.f32.gmra.mrb[0].mxu0 %v1540
  %v2242 = vpop.f32.mrb[0].mxu0
  %v2243 = vadd.f32 %v1713, %v2242
  %v2244 = vpop.f32.mrb[0].mxu0
  %v2245 = vadd.f32 %v1717, %v2244
  %2246 = vmatprep.mubr.f32.mxu0 %v1543
  %2247 = vmatmul.mubr.f32.gmra.mrb[0].mxu0 %v1542
  %v2248 = vpop.f32.mrb[0].mxu0
  %v2249 = vadd.f32 %v1713, %v2248
  %v2250 = vpop.f32.mrb[0].mxu0
  %v2251 = vadd.f32 %v1717, %v2250
  %2252 = vmatprep.mubr.f32.mxu0 %v1545
  %2253 = vmatmul.mubr.f32.gmra.mrb[0].mxu0 %v1544
  %v2254 = vpop.f32.mrb[0].mxu0
  %v2255 = vadd.f32 %v1713, %v2254
  %v2256 = vpop.f32.mrb[0].mxu0
  %v2257 = vadd.f32 %v1717, %v2256
  %2258 = vmatprep.mubr.f32.mxu0 %v1547
  %2259 = vmatmul.mubr.f32.gmra.mrb[0].mxu0 %v1546
  %v2260 = vpop.f32.mrb[0].mxu0
  %v2261 = vadd.f32 %v1713, %v2260
  %v2262 = vpop.f32.mrb[0].mxu0
  %v2263 = vadd.f32 %v1717, %v2262
  %2264 = vmatprep.mubr.f32.mxu0 %v1549
  %2265 = vmatmul.mubr.f32.gmra.mrb[0].mxu0 %v1548
  %v2266 = vpop.f32.mrb[0].mxu0
  %v2267 = vadd.f32 %v1713, %v2266
  %v2268 = vpop.f32.mrb[0].mxu0
  %v2269 = vadd.f32 %v1717, %v2268
  %2270 = vmatprep.mubr.f32.mxu0 %v1551
  %2271 = vmatmul.mubr.f32.gmra.mrb[0].mxu0 %v1550
  %v2272 = vpop.f32.mrb[0].mxu0
  %v2273 = vadd.f32 %v1713, %v2272
  %v2274 = vpop.f32.mrb[0].mxu0
  %v2275 = vadd.f32 %v1717, %v2274
  %2276 = vmatprep.mubr.f32.mxu0 %v1553
  %2277 = vmatmul.mubr.f32.gmra.mrb[0].mxu0 %v1552
  %v2278 = vpop.f32.mrb[0].mxu0
  %v2279 = vadd.f32 %v1713, %v2278
  %v2280 = vpop.f32.mrb[0].mxu0
  %v2281 = vadd.f32 %v1717, %v2280
  %2282 = vmatprep.mubr.f32.mxu0 %v1555
  %2283 = vmatmul.mubr.f32.gmra.mrb[0].mxu0 %v1554
  %v2284 = vpop.f32.mrb[0].mxu0
  %v2285 = vadd.f32 %v1713, %v2284
  %v2286 = vpop.f32.mrb[0].mxu0
  %v2287 = vadd.f32 %v1717, %v2286
  %2288 = vmatprep.mubr.f32.mxu0 %v1557
  %2289 = vmatmul.mubr.f32.gmra.mrb[0].mxu0 %v1556
  %v2290 = vpop.f32.mrb[0].mxu0
  %v2291 = vadd.f32 %v1713, %v2290
  %v2292 = vpop.f32.mrb[0].mxu0
  %v2293 = vadd.f32 %v1717, %v2292
  %2294 = vmatprep.mubr.f32.mxu0 %v1559
  %2295 = vmatmul.mubr.f32.gmra.mrb[0].mxu0 %v1558
  %v2296 = vpop.f32.mrb[0].mxu0
  %v2297 = vadd.f32 %v1713, %v2296
  %v2298 = vpop.f32.mrb[0].mxu0
  %v2299 = vadd.f32 %v1717, %v2298
  %2300 = vmatprep.mubr.f32.mxu0 %v1561
  %2301 = vmatmul.mubr.f32.gmra.mrb[0].mxu0 %v1560
  %v2302 = vpop.f32.mrb[0].mxu0
  %v2303 = vadd.f32 %v1713, %v2302
  %v2304 = vpop.f32.mrb[0].mxu0
  %v2305 = vadd.f32 %v1717, %v2304
  %2306 = vmatprep.mubr.f32.mxu0 %v1563
  %2307 = vmatmul.mubr.f32.gmra.mrb[0].mxu0 %v1562
  %v2308 = vpop.f32.mrb[0].mxu0
  %v2309 = vadd.f32 %v1713, %v2308
  %v2310 = vpop.f32.mrb[0].mxu0
  %v2311 = vadd.f32 %v1717, %v2310
  %2312 = vmatprep.mubr.f32.mxu0 %v1565
  %2313 = vmatmul.mubr.f32.gmra.mrb[0].mxu0 %v1564
  %v2314 = vpop.f32.mrb[0].mxu0
  %v2315 = vadd.f32 %v1713, %v2314
  %v2316 = vpop.f32.mrb[0].mxu0
  %v2317 = vadd.f32 %v1717, %v2316
  %2318 = vmatprep.mubr.f32.mxu0 %v1567
  %2319 = vmatmul.mubr.f32.gmra.mrb[0].mxu0 %v1566
  %v2320 = vpop.f32.mrb[0].mxu0
  %v2321 = vadd.f32 %v1713, %v2320
  %v2322 = vpop.f32.mrb[0].mxu0
  %v2323 = vadd.f32 %v1717, %v2322
  %2324 = vmatprep.mubr.f32.mxu0 %v1569
  %2325 = vmatmul.mubr.f32.gmra.mrb[0].mxu0 %v1568
  %v2326 = vpop.f32.mrb[0].mxu0
  %v2327 = vadd.f32 %v1713, %v2326
  %v2328 = vpop.f32.mrb[0].mxu0
  %v2329 = vadd.f32 %v1717, %v2328
  %2330 = vmatprep.mubr.f32.mxu0 %v1571
  %2331 = vmatmul.mubr.f32.gmra.mrb[0].mxu0 %v1570
  %v2332 = vpop.f32.mrb[0].mxu0
  %v2333 = vadd.f32 %v1713, %v2332
  %v2334 = vpop.f32.mrb[0].mxu0
  %v2335 = vadd.f32 %v1717, %v2334
  %2336 = vmatprep.mubr.f32.mxu0 %v1573
  %2337 = vmatmul.mubr.f32.gmra.mrb[0].mxu0 %v1572
  %v2338 = vpop.f32.mrb[0].mxu0
  %v2339 = vadd.f32 %v1713, %v2338
  %v2340 = vpop.f32.mrb[0].mxu0
  %v2341 = vadd.f32 %v1717, %v2340
  %2342 = vmatprep.mubr.f32.mxu0 %v1575
  %2343 = vmatmul.mubr.f32.gmra.mrb[0].mxu0 %v1574
  %v2344 = vpop.f32.mrb[0].mxu0
  %v2345 = vadd.f32 %v1713, %v2344
  %v2346 = vpop.f32.mrb[0].mxu0
  %v2347 = vadd.f32 %v1717, %v2346
  %2348 = vmatprep.mubr.f32.mxu0 %v1577
  %2349 = vmatmul.mubr.f32.gmra.mrb[0].mxu0 %v1576
  %v2350 = vpop.f32.mrb[0].mxu0
  %v2351 = vadd.f32 %v1713, %v2350
  %v2352 = vpop.f32.mrb[0].mxu0
  %v2353 = vadd.f32 %v1717, %v2352
  %2354 = vmatprep.mubr.f32.mxu0 %v1579
  %2355 = vmatmul.mubr.f32.gmra.mrb[0].mxu0 %v1578
  %v2356 = vpop.f32.mrb[0].mxu0
  %v2357 = vadd.f32 %v1713, %v2356
  %v2358 = vpop.f32.mrb[0].mxu0
  %v2359 = vadd.f32 %v1717, %v2358
  %2360 = vmatprep.mubr.f32.mxu0 %v1581
  %2361 = vmatmul.mubr.f32.gmra.mrb[0].mxu0 %v1580
  %v2362 = vpop.f32.mrb[0].mxu0
  %v2363 = vadd.f32 %v1713, %v2362
  %v2364 = vpop.f32.mrb[0].mxu0
  %v2365 = vadd.f32 %v1717, %v2364
  %2366 = vmatprep.mubr.f32.mxu0 %v1583
  %2367 = vmatmul.mubr.f32.gmra.mrb[0].mxu0 %v1582
  %v2368 = vpop.f32.mrb[0].mxu0
  %v2369 = vadd.f32 %v1713, %v2368
  %v2370 = vpop.f32.mrb[0].mxu0
  %v2371 = vadd.f32 %v1717, %v2370
  %2372 = vmatprep.mubr.f32.mxu0 %v1585
  %2373 = vmatmul.mubr.f32.gmra.mrb[0].mxu0 %v1584
  %v2374 = vpop.f32.mrb[0].mxu0
  %v2375 = vadd.f32 %v1713, %v2374
  %v2376 = vpop.f32.mrb[0].mxu0
  %v2377 = vadd.f32 %v1717, %v2376
  %2378 = vmatprep.mubr.f32.mxu0 %v1587
  %2379 = vmatmul.mubr.f32.gmra.mrb[0].mxu0 %v1586
  %v2380 = vpop.f32.mrb[0].mxu0
  %v2381 = vadd.f32 %v1713, %v2380
  %v2382 = vpop.f32.mrb[0].mxu0
  %v2383 = vadd.f32 %v1717, %v2382
  %2384 = vmatprep.mubr.f32.mxu0 %v1589
  %2385 = vmatmul.mubr.f32.gmra.mrb[0].mxu0 %v1588
  %v2386 = vpop.f32.mrb[0].mxu0
  %v2387 = vadd.f32 %v1713, %v2386
  %v2388 = vpop.f32.mrb[0].mxu0
  %v2389 = vadd.f32 %v1717, %v2388
  %2390 = vmatprep.mubr.f32.mxu0 %v1591
  %2391 = vmatmul.mubr.f32.gmra.mrb[0].mxu0 %v1590
  %v2392 = vpop.f32.mrb[0].mxu0
  %v2393 = vadd.f32 %v1713, %v2392
  %v2394 = vpop.f32.mrb[0].mxu0
  %v2395 = vadd.f32 %v1717, %v2394
  %2396 = vmatprep.mubr.f32.mxu0 %v1593
  %2397 = vmatmul.mubr.f32.gmra.mrb[0].mxu0 %v1592
  %v2398 = vpop.f32.mrb[0].mxu0
  %v2399 = vadd.f32 %v1713, %v2398
  %v2400 = vpop.f32.mrb[0].mxu0
  %v2401 = vadd.f32 %v1717, %v2400
  %2402 = vmatprep.mubr.f32.mxu0 %v1595
  %2403 = vmatmul.mubr.f32.gmra.mrb[0].mxu0 %v1594
  %v2404 = vpop.f32.mrb[0].mxu0
  %v2405 = vadd.f32 %v1713, %v2404
  %v2406 = vpop.f32.mrb[0].mxu0
  %v2407 = vadd.f32 %v1717, %v2406
  %2408 = vmatprep.mubr.f32.mxu0 %v1597
  %2409 = vmatmul.mubr.f32.gmra.mrb[0].mxu0 %v1596
  %v2410 = vpop.f32.mrb[0].mxu0
  %v2411 = vadd.f32 %v1713, %v2410
  %v2412 = vpop.f32.mrb[0].mxu0
  %v2413 = vadd.f32 %v1717, %v2412
  %2414 = vmatprep.mubr.f32.mxu0 %v1599
  %2415 = vmatmul.mubr.f32.gmra.mrb[0].mxu0 %v1598
  %v2416 = vpop.f32.mrb[0].mxu0
  %v2417 = vadd.f32 %v1713, %v2416
  %v2418 = vpop.f32.mrb[0].mxu0
  %v2419 = vadd.f32 %v1717, %v2418
  %2420 = vmatprep.mubr.f32.mxu0 %v1601
  %2421 = vmatmul.mubr.f32.gmra.mrb[0].mxu0 %v1600
  %v2422 = vpop.f32.mrb[0].mxu0
  %v2423 = vadd.f32 %v1713, %v2422
  %v2424 = vpop.f32.mrb[0].mxu0
  %v2425 = vadd.f32 %v1717, %v2424
  %2426 = vmatprep.mubr.f32.mxu0 %v1603
  %2427 = vmatmul.mubr.f32.gmra.mrb[0].mxu0 %v1602
  %v2428 = vpop.f32.mrb[0].mxu0
  %v2429 = vadd.f32 %v1713, %v2428
  %v2430 = vpop.f32.mrb[0].mxu0
  %v2431 = vadd.f32 %v1717, %v2430
  %2432 = vmatprep.mubr.f32.mxu0 %v1605
  %2433 = vmatmul.mubr.f32.gmra.mrb[0].mxu0 %v1604
  %v2434 = vpop.f32.mrb[0].mxu0
  %v2435 = vadd.f32 %v1713, %v2434
  %v2436 = vpop.f32.mrb[0].mxu0
  %v2437 = vadd.f32 %v1717, %v2436
  %2438 = vmatprep.mubr.f32.mxu0 %v1607
  %2439 = vmatmul.mubr.f32.gmra.mrb[0].mxu0 %v1606
  %v2440 = vpop.f32.mrb[0].mxu0
  %v2441 = vadd.f32 %v1713, %v2440
  %v2442 = vpop.f32.mrb[0].mxu0
  %v2443 = vadd.f32 %v1717, %v2442
  %2444 = vmatprep.mubr.f32.mxu0 %v1609
  %2445 = vmatmul.mubr.f32.gmra.mrb[0].mxu0 %v1608
  %v2446 = vpop.f32.mrb[0].mxu0
  %v2447 = vadd.f32 %v1713, %v2446
  %v2448 = vpop.f32.mrb[0].mxu0
  %v2449 = vadd.f32 %v1717, %v2448
  %2450 = vmatprep.mubr.f32.mxu0 %v1611
  %2451 = vmatmul.mubr.f32.gmra.mrb[0].mxu0 %v1610
  %v2452 = vpop.f32.mrb[0].mxu0
  %v2453 = vadd.f32 %v1713, %v2452
  %v2454 = vpop.f32.mrb[0].mxu0
  %v2455 = vadd.f32 %v1717, %v2454
  %2456 = vmatprep.mubr.f32.mxu0 %v1613
  %2457 = vmatmul.mubr.f32.gmra.mrb[0].mxu0 %v1612
  %v2458 = vpop.f32.mrb[0].mxu0
  %v2459 = vadd.f32 %v1713, %v2458
  %v2460 = vpop.f32.mrb[0].mxu0
  %v2461 = vadd.f32 %v1717, %v2460
  %2462 = vmatprep.mubr.f32.mxu0 %v1615
  %2463 = vmatmul.mubr.f32.gmra.mrb[0].mxu0 %v1614
  %v2464 = vpop.f32.mrb[0].mxu0
  %v2465 = vadd.f32 %v1713, %v2464
  %v2466 = vpop.f32.mrb[0].mxu0
  %v2467 = vadd.f32 %v1717, %v2466
  %2468 = vmatprep.mubr.f32.mxu0 %v1617
  %2469 = vmatmul.mubr.f32.gmra.mrb[0].mxu0 %v1616
  %v2470 = vpop.f32.mrb[0].mxu0
  %v2471 = vadd.f32 %v1713, %v2470
  %v2472 = vpop.f32.mrb[0].mxu0
  %v2473 = vadd.f32 %v1717, %v2472
  %2474 = vmatprep.mubr.f32.mxu0 %v1619
  %2475 = vmatmul.mubr.f32.gmra.mrb[0].mxu0 %v1618
  %v2476 = vpop.f32.mrb[0].mxu0
  %v2477 = vadd.f32 %v1713, %v2476
  %v2478 = vpop.f32.mrb[0].mxu0
  %v2479 = vadd.f32 %v1717, %v2478
  %2480 = vmatprep.mubr.f32.mxu0 %v1621
  %2481 = vmatmul.mubr.f32.gmra.mrb[0].mxu0 %v1620
  %v2482 = vpop.f32.mrb[0].mxu0
  %v2483 = vadd.f32 %v1713, %v2482
  %v2484 = vpop.f32.mrb[0].mxu0
  %v2485 = vadd.f32 %v1717, %v2484
  %2486 = vmatprep.mubr.f32.mxu0 %v1623
  %2487 = vmatmul.mubr.f32.gmra.mrb[0].mxu0 %v1622
  %v2488 = vpop.f32.mrb[0].mxu0
  %v2489 = vadd.f32 %v1713, %v2488
  %v2490 = vpop.f32.mrb[0].mxu0
  %v2491 = vadd.f32 %v1717, %v2490
  %2492 = vmatprep.mubr.f32.mxu0 %v1625
  %2493 = vmatmul.mubr.f32.gmra.mrb[0].mxu0 %v1624
  %v2494 = vpop.f32.mrb[0].mxu0
  %v2495 = vadd.f32 %v1713, %v2494
  %v2496 = vpop.f32.mrb[0].mxu0
  %v2497 = vadd.f32 %v1717, %v2496
  %2498 = vmatprep.mubr.f32.mxu0 %v1627
  %2499 = vmatmul.mubr.f32.gmra.mrb[0].mxu0 %v1626
  %v2500 = vpop.f32.mrb[0].mxu0
  %v2501 = vadd.f32 %v1713, %v2500
  %v2502 = vpop.f32.mrb[0].mxu0
  %v2503 = vadd.f32 %v1717, %v2502
  %2504 = vmatprep.mubr.f32.mxu0 %v1629
  %2505 = vmatmul.mubr.f32.gmra.mrb[0].mxu0 %v1628
  %v2506 = vpop.f32.mrb[0].mxu0
  %v2507 = vadd.f32 %v1713, %v2506
  %v2508 = vpop.f32.mrb[0].mxu0
  %v2509 = vadd.f32 %v1717, %v2508
  %2510 = vmatprep.mubr.f32.mxu0 %v1631
  %2511 = vmatmul.mubr.f32.gmra.mrb[0].mxu0 %v1630
  %v2512 = vpop.f32.mrb[0].mxu0
  %v2513 = vadd.f32 %v1713, %v2512
  %v2514 = vpop.f32.mrb[0].mxu0
  %v2515 = vadd.f32 %v1717, %v2514
  %2516 = vmatprep.mubr.f32.mxu0 %v1633
  %2517 = vmatmul.mubr.f32.gmra.mrb[0].mxu0 %v1632
  %v2518 = vpop.f32.mrb[0].mxu0
  %v2519 = vadd.f32 %v1713, %v2518
  %v2520 = vpop.f32.mrb[0].mxu0
  %v2521 = vadd.f32 %v1717, %v2520
  %2522 = vmatprep.mubr.f32.mxu0 %v1635
  %2523 = vmatmul.mubr.f32.gmra.mrb[0].mxu0 %v1634
  %v2524 = vpop.f32.mrb[0].mxu0
  %v2525 = vadd.f32 %v1713, %v2524
  %v2526 = vpop.f32.mrb[0].mxu0
  %v2527 = vadd.f32 %v1717, %v2526
  %2528 = vmatprep.mubr.f32.mxu0 %v1637
  %2529 = vmatmul.mubr.f32.gmra.mrb[0].mxu0 %v1636
  %v2530 = vpop.f32.mrb[0].mxu0
  %v2531 = vadd.f32 %v1713, %v2530
  %v2532 = vpop.f32.mrb[0].mxu0
  %v2533 = vadd.f32 %v1717, %v2532
  %2534 = vmatprep.mubr.f32.mxu0 %v1639
  %2535 = vmatmul.mubr.f32.gmra.mrb[0].mxu0 %v1638
  %v2536 = vpop.f32.mrb[0].mxu0
  %v2537 = vadd.f32 %v1713, %v2536
  %v2538 = vpop.f32.mrb[0].mxu0
  %v2539 = vadd.f32 %v1717, %v2538
  %2540 = vmatprep.mubr.f32.mxu0 %v1641
  %2541 = vmatmul.mubr.f32.gmra.mrb[0].mxu0 %v1640
  %v2542 = vpop.f32.mrb[0].mxu0
  %v2543 = vadd.f32 %v1713, %v2542
  %v2544 = vpop.f32.mrb[0].mxu0
  %v2545 = vadd.f32 %v1717, %v2544
  %2546 = vmatprep.mubr.f32.mxu0 %v1643
  %2547 = vmatmul.mubr.f32.gmra.mrb[0].mxu0 %v1642
  %v2548 = vpop.f32.mrb[0].mxu0
  %v2549 = vadd.f32 %v1713, %v2548
  %v2550 = vpop.f32.mrb[0].mxu0
  %v2551 = vadd.f32 %v1717, %v2550
  %2552 = vdwg.mxu0
  %v2553 = vmax.f32 %v1787, 0.0
  %v2554 = vmax.f32 %v1789, 0.0
  %v2555 = vmax.f32 %v1793, 0.0
  %v2556 = vmax.f32 %v1795, 0.0
  %v2557 = vmax.f32 %v1799, 0.0
  %v2558 = vmax.f32 %v1801, 0.0
  %v2559 = vmax.f32 %v1805, 0.0
  %v2560 = vmax.f32 %v1807, 0.0
  %v2561 = vmax.f32 %v1811, 0.0
  %v2562 = vmax.f32 %v1813, 0.0
  %v2563 = vmax.f32 %v1817, 0.0
  %v2564 = vmax.f32 %v1819, 0.0
  %v2565 = vmax.f32 %v1823, 0.0
  %v2566 = vmax.f32 %v1825, 0.0
  %v2567 = vmax.f32 %v1829, 0.0
  %v2568 = vmax.f32 %v1831, 0.0
  %v2569 = vmax.f32 %v1835, 0.0
  %v2570 = vmax.f32 %v1837, 0.0
  %v2571 = vmax.f32 %v1841, 0.0
  %v2572 = vmax.f32 %v1843, 0.0
  %v2573 = vmax.f32 %v1847, 0.0
  %v2574 = vmax.f32 %v1849, 0.0
  %v2575 = vmax.f32 %v1853, 0.0
  %v2576 = vmax.f32 %v1855, 0.0
  %v2577 = vmax.f32 %v1859, 0.0
  %v2578 = vmax.f32 %v1861, 0.0
  %v2579 = vmax.f32 %v1865, 0.0
  %v2580 = vmax.f32 %v1867, 0.0
  %v2581 = vmax.f32 %v1871, 0.0
  %v2582 = vmax.f32 %v1873, 0.0
  %v2583 = vmax.f32 %v1877, 0.0
  %v2584 = vmax.f32 %v1879, 0.0
  %v2585 = vmax.f32 %v1883, 0.0
  %v2586 = vmax.f32 %v1885, 0.0
  %v2587 = vmax.f32 %v1889, 0.0
  %v2588 = vmax.f32 %v1891, 0.0
  %v2589 = vmax.f32 %v1895, 0.0
  %v2590 = vmax.f32 %v1897, 0.0
  %v2591 = vmax.f32 %v1901, 0.0
  %v2592 = vmax.f32 %v1903, 0.0
  %v2593 = vmax.f32 %v1907, 0.0
  %v2594 = vmax.f32 %v1909, 0.0
  %v2595 = vmax.f32 %v1913, 0.0
  %v2596 = vmax.f32 %v1915, 0.0
  %v2597 = vmax.f32 %v1919, 0.0
  %v2598 = vmax.f32 %v1921, 0.0
  %v2599 = vmax.f32 %v1925, 0.0
  %v2600 = vmax.f32 %v1927, 0.0
  %v2601 = vmax.f32 %v1931, 0.0
  %v2602 = vmax.f32 %v1933, 0.0
  %v2603 = vmax.f32 %v1937, 0.0
  %v2604 = vmax.f32 %v1939, 0.0
  %v2605 = vmax.f32 %v1943, 0.0
  %v2606 = vmax.f32 %v1945, 0.0
  %v2607 = vmax.f32 %v1949, 0.0
  %v2608 = vmax.f32 %v1951, 0.0
  %v2609 = vmax.f32 %v1955, 0.0
  %v2610 = vmax.f32 %v1957, 0.0
  %v2611 = vmax.f32 %v1961, 0.0
  %v2612 = vmax.f32 %v1963, 0.0
  %v2613 = vmax.f32 %v1967, 0.0
  %v2614 = vmax.f32 %v1969, 0.0
  %v2615 = vmax.f32 %v1973, 0.0
  %v2616 = vmax.f32 %v1975, 0.0
  %v2617 = vmax.f32 %v1979, 0.0
  %v2618 = vmax.f32 %v1981, 0.0
  %v2619 = vmax.f32 %v1985, 0.0
  %v2620 = vmax.f32 %v1987, 0.0
  %v2621 = vmax.f32 %v1991, 0.0
  %v2622 = vmax.f32 %v1993, 0.0
  %v2623 = vmax.f32 %v1997, 0.0
  %v2624 = vmax.f32 %v1999, 0.0
  %v2625 = vmax.f32 %v2003, 0.0
  %v2626 = vmax.f32 %v2005, 0.0
  %v2627 = vmax.f32 %v2009, 0.0
  %v2628 = vmax.f32 %v2011, 0.0
  %v2629 = vmax.f32 %v2015, 0.0
  %v2630 = vmax.f32 %v2017, 0.0
  %v2631 = vmax.f32 %v2021, 0.0
  %v2632 = vmax.f32 %v2023, 0.0
  %v2633 = vmax.f32 %v2027, 0.0
  %v2634 = vmax.f32 %v2029, 0.0
  %v2635 = vmax.f32 %v2033, 0.0
  %v2636 = vmax.f32 %v2035, 0.0
  %v2637 = vmax.f32 %v2039, 0.0
  %v2638 = vmax.f32 %v2041, 0.0
  %v2639 = vmax.f32 %v2045, 0.0
  %v2640 = vmax.f32 %v2047, 0.0
  %v2641 = vmax.f32 %v2051, 0.0
  %v2642 = vmax.f32 %v2053, 0.0
  %v2643 = vmax.f32 %v2057, 0.0
  %v2644 = vmax.f32 %v2059, 0.0
  %v2645 = vmax.f32 %v2063, 0.0
  %v2646 = vmax.f32 %v2065, 0.0
  %v2647 = vmax.f32 %v2069, 0.0
  %v2648 = vmax.f32 %v2071, 0.0
  %v2649 = vmax.f32 %v2075, 0.0
  %v2650 = vmax.f32 %v2077, 0.0
  %v2651 = vmax.f32 %v2081, 0.0
  %v2652 = vmax.f32 %v2083, 0.0
  %v2653 = vmax.f32 %v2087, 0.0
  %v2654 = vmax.f32 %v2089, 0.0
  %v2655 = vmax.f32 %v2093, 0.0
  %v2656 = vmax.f32 %v2095, 0.0
  %v2657 = vmax.f32 %v2099, 0.0
  %v2658 = vmax.f32 %v2101, 0.0
  %v2659 = vmax.f32 %v2105, 0.0
  %v2660 = vmax.f32 %v2107, 0.0
  %v2661 = vmax.f32 %v2111, 0.0
  %v2662 = vmax.f32 %v2113, 0.0
  %v2663 = vmax.f32 %v2117, 0.0
  %v2664 = vmax.f32 %v2119, 0.0
  %v2665 = vmax.f32 %v2123, 0.0
  %v2666 = vmax.f32 %v2125, 0.0
  %v2667 = vmax.f32 %v2129, 0.0
  %v2668 = vmax.f32 %v2131, 0.0
  %v2669 = vmax.f32 %v2135, 0.0
  %v2670 = vmax.f32 %v2137, 0.0
  %v2671 = vmax.f32 %v2141, 0.0
  %v2672 = vmax.f32 %v2143, 0.0
  %v2673 = vmax.f32 %v2147, 0.0
  %v2674 = vmax.f32 %v2149, 0.0
  %v2675 = vmax.f32 %v2153, 0.0
  %v2676 = vmax.f32 %v2155, 0.0
  %v2677 = vmax.f32 %v2159, 0.0
  %v2678 = vmax.f32 %v2161, 0.0
  %v2679 = vmax.f32 %v2165, 0.0
  %v2680 = vmax.f32 %v2167, 0.0
  %v2681 = vmax.f32 %v2171, 0.0
  %v2682 = vmax.f32 %v2173, 0.0
  %v2683 = vmax.f32 %v2177, 0.0
  %v2684 = vmax.f32 %v2179, 0.0
  %v2685 = vmax.f32 %v2183, 0.0
  %v2686 = vmax.f32 %v2185, 0.0
  %v2687 = vmax.f32 %v2189, 0.0
  %v2688 = vmax.f32 %v2191, 0.0
  %v2689 = vmax.f32 %v2195, 0.0
  %v2690 = vmax.f32 %v2197, 0.0
  %v2691 = vmax.f32 %v2201, 0.0
  %v2692 = vmax.f32 %v2203, 0.0
  %v2693 = vmax.f32 %v2207, 0.0
  %v2694 = vmax.f32 %v2209, 0.0
  %v2695 = vmax.f32 %v2213, 0.0
  %v2696 = vmax.f32 %v2215, 0.0
  %v2697 = vmax.f32 %v2219, 0.0
  %v2698 = vmax.f32 %v2221, 0.0
  %v2699 = vmax.f32 %v2225, 0.0
  %v2700 = vmax.f32 %v2227, 0.0
  %v2701 = vmax.f32 %v2231, 0.0
  %v2702 = vmax.f32 %v2233, 0.0
  %v2703 = vmax.f32 %v2237, 0.0
  %v2704 = vmax.f32 %v2239, 0.0
  %v2705 = vmax.f32 %v2243, 0.0
  %v2706 = vmax.f32 %v2245, 0.0
  %v2707 = vmax.f32 %v2249, 0.0
  %v2708 = vmax.f32 %v2251, 0.0
  %v2709 = vmax.f32 %v2255, 0.0
  %v2710 = vmax.f32 %v2257, 0.0
  %v2711 = vmax.f32 %v2261, 0.0
  %v2712 = vmax.f32 %v2263, 0.0
  %v2713 = vmax.f32 %v2267, 0.0
  %v2714 = vmax.f32 %v2269, 0.0
  %v2715 = vmax.f32 %v2273, 0.0
  %v2716 = vmax.f32 %v2275, 0.0
  %v2717 = vmax.f32 %v2279, 0.0
  %v2718 = vmax.f32 %v2281, 0.0
  %v2719 = vmax.f32 %v2285, 0.0
  %v2720 = vmax.f32 %v2287, 0.0
  %v2721 = vmax.f32 %v2291, 0.0
  %v2722 = vmax.f32 %v2293, 0.0
  %v2723 = vmax.f32 %v2297, 0.0
  %v2724 = vmax.f32 %v2299, 0.0
  %v2725 = vmax.f32 %v2303, 0.0
  %v2726 = vmax.f32 %v2305, 0.0
  %v2727 = vmax.f32 %v2309, 0.0
  %v2728 = vmax.f32 %v2311, 0.0
  %v2729 = vmax.f32 %v2315, 0.0
  %v2730 = vmax.f32 %v2317, 0.0
  %v2731 = vmax.f32 %v2321, 0.0
  %v2732 = vmax.f32 %v2323, 0.0
  %v2733 = vmax.f32 %v2327, 0.0
  %v2734 = vmax.f32 %v2329, 0.0
  %v2735 = vmax.f32 %v2333, 0.0
  %v2736 = vmax.f32 %v2335, 0.0
  %v2737 = vmax.f32 %v2339, 0.0
  %v2738 = vmax.f32 %v2341, 0.0
  %v2739 = vmax.f32 %v2345, 0.0
  %v2740 = vmax.f32 %v2347, 0.0
  %v2741 = vmax.f32 %v2351, 0.0
  %v2742 = vmax.f32 %v2353, 0.0
  %v2743 = vmax.f32 %v2357, 0.0
  %v2744 = vmax.f32 %v2359, 0.0
  %v2745 = vmax.f32 %v2363, 0.0
  %v2746 = vmax.f32 %v2365, 0.0
  %v2747 = vmax.f32 %v2369, 0.0
  %v2748 = vmax.f32 %v2371, 0.0
  %v2749 = vmax.f32 %v2375, 0.0
  %v2750 = vmax.f32 %v2377, 0.0
  %v2751 = vmax.f32 %v2381, 0.0
  %v2752 = vmax.f32 %v2383, 0.0
  %v2753 = vmax.f32 %v2387, 0.0
  %v2754 = vmax.f32 %v2389, 0.0
  %v2755 = vmax.f32 %v2393, 0.0
  %v2756 = vmax.f32 %v2395, 0.0
  %v2757 = vmax.f32 %v2399, 0.0
  %v2758 = vmax.f32 %v2401, 0.0
  %v2759 = vmax.f32 %v2405, 0.0
  %v2760 = vmax.f32 %v2407, 0.0
  %v2761 = vmax.f32 %v2411, 0.0
  %v2762 = vmax.f32 %v2413, 0.0
  %v2763 = vmax.f32 %v2417, 0.0
  %v2764 = vmax.f32 %v2419, 0.0
  %v2765 = vmax.f32 %v2423, 0.0
  %v2766 = vmax.f32 %v2425, 0.0
  %v2767 = vmax.f32 %v2429, 0.0
  %v2768 = vmax.f32 %v2431, 0.0
  %v2769 = vmax.f32 %v2435, 0.0
  %v2770 = vmax.f32 %v2437, 0.0
  %v2771 = vmax.f32 %v2441, 0.0
  %v2772 = vmax.f32 %v2443, 0.0
  %v2773 = vmax.f32 %v2447, 0.0
  %v2774 = vmax.f32 %v2449, 0.0
  %v2775 = vmax.f32 %v2453, 0.0
  %v2776 = vmax.f32 %v2455, 0.0
  %v2777 = vmax.f32 %v2459, 0.0
  %v2778 = vmax.f32 %v2461, 0.0
  %v2779 = vmax.f32 %v2465, 0.0
  %v2780 = vmax.f32 %v2467, 0.0
  %v2781 = vmax.f32 %v2471, 0.0
  %v2782 = vmax.f32 %v2473, 0.0
  %v2783 = vmax.f32 %v2477, 0.0
  %v2784 = vmax.f32 %v2479, 0.0
  %v2785 = vmax.f32 %v2483, 0.0
  %v2786 = vmax.f32 %v2485, 0.0
  %v2787 = vmax.f32 %v2489, 0.0
  %v2788 = vmax.f32 %v2491, 0.0
  %v2789 = vmax.f32 %v2495, 0.0
  %v2790 = vmax.f32 %v2497, 0.0
  %v2791 = vmax.f32 %v2501, 0.0
  %v2792 = vmax.f32 %v2503, 0.0
  %v2793 = vmax.f32 %v2507, 0.0
  %v2794 = vmax.f32 %v2509, 0.0
  %v2795 = vmax.f32 %v2513, 0.0
  %v2796 = vmax.f32 %v2515, 0.0
  %v2797 = vmax.f32 %v2519, 0.0
  %v2798 = vmax.f32 %v2521, 0.0
  %v2799 = vmax.f32 %v2525, 0.0
  %v2800 = vmax.f32 %v2527, 0.0
  %v2801 = vmax.f32 %v2531, 0.0
  %v2802 = vmax.f32 %v2533, 0.0
  %v2803 = vmax.f32 %v2537, 0.0
  %v2804 = vmax.f32 %v2539, 0.0
  %v2805 = vmax.f32 %v2543, 0.0
  %v2806 = vmax.f32 %v2545, 0.0
  %v2807 = vmax.f32 %v2549, 0.0
  %v2808 = vmax.f32 %v2551, 0.0
  %v2809 = vld [vmem:[%s5] sm:$0xff]
  %v2810 = vld [vmem:[%s5 + $0x8] sm:$0xff]
  %v2811 = vld [vmem:[%s6] sm:$0xff]
  %2813 = vset.pattern.permute.xlu0 0
  %2814 = vperm.xlu0 %2813, %v2811
  %v2815 = vpop.permute.xlu0 %2814
  %2817 = vmatprep.subr.mxu0 %v2554
  %2818 = vmatpush1.xpose.msra.mxu0 %v2553
  %2819 = vmatprep.subr.mxu0 %v2556
  %2820 = vmatpush1.xpose.msra.mxu0 %v2555
  %2821 = vmatprep.subr.mxu0 %v2558
  %2822 = vmatpush1.xpose.msra.mxu0 %v2557
  %2823 = vmatprep.subr.mxu0 %v2560
  %2824 = vmatpush1.xpose.msra.mxu0 %v2559
  %2825 = vmatprep.subr.mxu0 %v2562
  %2826 = vmatpush1.xpose.msra.mxu0 %v2561
  %2827 = vmatprep.subr.mxu0 %v2564
  %2828 = vmatpush1.xpose.msra.mxu0 %v2563
  %2829 = vmatprep.subr.mxu0 %v2566
  %2830 = vmatpush1.xpose.msra.mxu0 %v2565
  %2831 = vmatprep.subr.mxu0 %v2568
  %2832 = vmatpush1.xpose.msra.mxu0 %v2567
  %2833 = vmatprep.subr.mxu0 %v2570
  %2834 = vmatpush1.xpose.msra.mxu0 %v2569
  %2835 = vmatprep.subr.mxu0 %v2572
  %2836 = vmatpush1.xpose.msra.mxu0 %v2571
  %2837 = vmatprep.subr.mxu0 %v2574
  %2838 = vmatpush1.xpose.msra.mxu0 %v2573
  %2839 = vmatprep.subr.mxu0 %v2576
  %2840 = vmatpush1.xpose.msra.mxu0 %v2575
  %2841 = vmatprep.subr.mxu0 %v2578
  %2842 = vmatpush1.xpose.msra.mxu0 %v2577
  %2843 = vmatprep.subr.mxu0 %v2580
  %2844 = vmatpush1.xpose.msra.mxu0 %v2579
  %2845 = vmatprep.subr.mxu0 %v2582
  %2846 = vmatpush1.xpose.msra.mxu0 %v2581
  %2847 = vmatprep.subr.mxu0 %v2584
  %2848 = vmatpush1.xpose.msra.mxu0 %v2583
  %2849 = vmatprep.subr.mxu0 %v2586
  %2850 = vmatpush1.xpose.msra.mxu0 %v2585
  %2851 = vmatprep.subr.mxu0 %v2588
  %2852 = vmatpush1.xpose.msra.mxu0 %v2587
  %2853 = vmatprep.subr.mxu0 %v2590
  %2854 = vmatpush1.xpose.msra.mxu0 %v2589
  %2855 = vmatprep.subr.mxu0 %v2592
  %2856 = vmatpush1.xpose.msra.mxu0 %v2591
  %2857 = vmatprep.subr.mxu0 %v2594
  %2858 = vmatpush1.xpose.msra.mxu0 %v2593
  %2859 = vmatprep.subr.mxu0 %v2596
  %2860 = vmatpush1.xpose.msra.mxu0 %v2595
  %2861 = vmatprep.subr.mxu0 %v2598
  %2862 = vmatpush1.xpose.msra.mxu0 %v2597
  %2863 = vmatprep.subr.mxu0 %v2600
  %2864 = vmatpush1.xpose.msra.mxu0 %v2599
  %2865 = vmatprep.subr.mxu0 %v2602
  %2866 = vmatpush1.xpose.msra.mxu0 %v2601
  %2867 = vmatprep.subr.mxu0 %v2604
  %2868 = vmatpush1.xpose.msra.mxu0 %v2603
  %2869 = vmatprep.subr.mxu0 %v2606
  %2870 = vmatpush1.xpose.msra.mxu0 %v2605
  %2871 = vmatprep.subr.mxu0 %v2608
  %2872 = vmatpush1.xpose.msra.mxu0 %v2607
  %2873 = vmatprep.subr.mxu0 %v2610
  %2874 = vmatpush1.xpose.msra.mxu0 %v2609
  %2875 = vmatprep.subr.mxu0 %v2612
  %2876 = vmatpush1.xpose.msra.mxu0 %v2611
  %2877 = vmatprep.subr.mxu0 %v2614
  %2878 = vmatpush1.xpose.msra.mxu0 %v2613
  %2879 = vmatprep.subr.mxu0 %v2616
  %2880 = vmatpush1.xpose.msra.mxu0 %v2615
  %2881 = vmatprep.mubr.f32.mxu0 %v2810
  %2882 = vmatmul.mubr.f32.gmra.mrb[0].mxu0 %v2809
  %v2883 = vpop.f32.mrb[0].mxu0
  %v2884 = vadd.f32 %v2815, %v2883
  %v2885 = vpop.f32.mrb[0].mxu0
  %v2886 = vadd.f32 %v2815, %v2885
  %2887 = vdwg.mxu0
  %2888 = vmatprep.subr.mxu0 %v2618
  %2889 = vmatpush1.xpose.msra.mxu0 %v2617
  %2890 = vmatprep.subr.mxu0 %v2620
  %2891 = vmatpush1.xpose.msra.mxu0 %v2619
  %2892 = vmatprep.subr.mxu0 %v2622
  %2893 = vmatpush1.xpose.msra.mxu0 %v2621
  %2894 = vmatprep.subr.mxu0 %v2624
  %2895 = vmatpush1.xpose.msra.mxu0 %v2623
  %2896 = vmatprep.subr.mxu0 %v2626
  %2897 = vmatpush1.xpose.msra.mxu0 %v2625
  %2898 = vmatprep.subr.mxu0 %v2628
  %2899 = vmatpush1.xpose.msra.mxu0 %v2627
  %2900 = vmatprep.subr.mxu0 %v2630
  %2901 = vmatpush1.xpose.msra.mxu0 %v2629
  %2902 = vmatprep.subr.mxu0 %v2632
  %2903 = vmatpush1.xpose.msra.mxu0 %v2631
  %2904 = vmatprep.subr.mxu0 %v2634
  %2905 = vmatpush1.xpose.msra.mxu0 %v2633
  %2906 = vmatprep.subr.mxu0 %v2636
  %2907 = vmatpush1.xpose.msra.mxu0 %v2635
  %2908 = vmatprep.subr.mxu0 %v2638
  %2909 = vmatpush1.xpose.msra.mxu0 %v2637
  %2910 = vmatprep.subr.mxu0 %v2640
  %2911 = vmatpush1.xpose.msra.mxu0 %v2639
  %2912 = vmatprep.subr.mxu0 %v2642
  %2913 = vmatpush1.xpose.msra.mxu0 %v2641
  %2914 = vmatprep.subr.mxu0 %v2644
  %2915 = vmatpush1.xpose.msra.mxu0 %v2643
  %2916 = vmatprep.subr.mxu0 %v2646
  %2917 = vmatpush1.xpose.msra.mxu0 %v2645
  %2918 = vmatprep.subr.mxu0 %v2648
  %2919 = vmatpush1.xpose.msra.mxu0 %v2647
  %2920 = vmatprep.subr.mxu0 %v2650
  %2921 = vmatpush1.xpose.msra.mxu0 %v2649
  %2922 = vmatprep.subr.mxu0 %v2652
  %2923 = vmatpush1.xpose.msra.mxu0 %v2651
  %2924 = vmatprep.subr.mxu0 %v2654
  %2925 = vmatpush1.xpose.msra.mxu0 %v2653
  %2926 = vmatprep.subr.mxu0 %v2656
  %2927 = vmatpush1.xpose.msra.mxu0 %v2655
  %2928 = vmatprep.subr.mxu0 %v2658
  %2929 = vmatpush1.xpose.msra.mxu0 %v2657
  %2930 = vmatprep.subr.mxu0 %v2660
  %2931 = vmatpush1.xpose.msra.mxu0 %v2659
  %2932 = vmatprep.subr.mxu0 %v2662
  %2933 = vmatpush1.xpose.msra.mxu0 %v2661
  %2934 = vmatprep.subr.mxu0 %v2664
  %2935 = vmatpush1.xpose.msra.mxu0 %v2663
  %2936 = vmatprep.subr.mxu0 %v2666
  %2937 = vmatpush1.xpose.msra.mxu0 %v2665
  %2938 = vmatprep.subr.mxu0 %v2668
  %2939 = vmatpush1.xpose.msra.mxu0 %v2667
  %2940 = vmatprep.subr.mxu0 %v2670
  %2941 = vmatpush1.xpose.msra.mxu0 %v2669
  %2942 = vmatprep.subr.mxu0 %v2672
  %2943 = vmatpush1.xpose.msra.mxu0 %v2671
  %2944 = vmatprep.subr.mxu0 %v2674
  %2945 = vmatpush1.xpose.msra.mxu0 %v2673
  %2946 = vmatprep.subr.mxu0 %v2676
  %2947 = vmatpush1.xpose.msra.mxu0 %v2675
  %2948 = vmatprep.subr.mxu0 %v2678
  %2949 = vmatpush1.xpose.msra.mxu0 %v2677
  %2950 = vmatprep.subr.mxu0 %v2680
  %2951 = vmatpush1.xpose.msra.mxu0 %v2679
  %2952 = vmatprep.mubr.f32.mxu0 %v2810
  %2953 = vmatmul.mubr.f32.gmra.mrb[0].mxu0 %v2809
  %v2954 = vpop.f32.mrb[0].mxu0
  %v2955 = vadd.f32 %v2815, %v2954
  %v2956 = vpop.f32.mrb[0].mxu0
  %v2957 = vadd.f32 %v2815, %v2956
  %2958 = vdwg.mxu0
  %2959 = vmatprep.subr.mxu0 %v2682
  %2960 = vmatpush1.xpose.msra.mxu0 %v2681
  %2961 = vmatprep.subr.mxu0 %v2684
  %2962 = vmatpush1.xpose.msra.mxu0 %v2683
  %2963 = vmatprep.subr.mxu0 %v2686
  %2964 = vmatpush1.xpose.msra.mxu0 %v2685
  %2965 = vmatprep.subr.mxu0 %v2688
  %2966 = vmatpush1.xpose.msra.mxu0 %v2687
  %2967 = vmatprep.subr.mxu0 %v2690
  %2968 = vmatpush1.xpose.msra.mxu0 %v2689
  %2969 = vmatprep.subr.mxu0 %v2692
  %2970 = vmatpush1.xpose.msra.mxu0 %v2691
  %2971 = vmatprep.subr.mxu0 %v2694
  %2972 = vmatpush1.xpose.msra.mxu0 %v2693
  %2973 = vmatprep.subr.mxu0 %v2696
  %2974 = vmatpush1.xpose.msra.mxu0 %v2695
  %2975 = vmatprep.subr.mxu0 %v2698
  %2976 = vmatpush1.xpose.msra.mxu0 %v2697
  %2977 = vmatprep.subr.mxu0 %v2700
  %2978 = vmatpush1.xpose.msra.mxu0 %v2699
  %2979 = vmatprep.subr.mxu0 %v2702
  %2980 = vmatpush1.xpose.msra.mxu0 %v2701
  %2981 = vmatprep.subr.mxu0 %v2704
  %2982 = vmatpush1.xpose.msra.mxu0 %v2703
  %2983 = vmatprep.subr.mxu0 %v2706
  %2984 = vmatpush1.xpose.msra.mxu0 %v2705
  %2985 = vmatprep.subr.mxu0 %v2708
  %2986 = vmatpush1.xpose.msra.mxu0 %v2707
  %2987 = vmatprep.subr.mxu0 %v2710
  %2988 = vmatpush1.xpose.msra.mxu0 %v2709
  %2989 = vmatprep.subr.mxu0 %v2712
  %2990 = vmatpush1.xpose.msra.mxu0 %v2711
  %2991 = vmatprep.subr.mxu0 %v2714
  %2992 = vmatpush1.xpose.msra.mxu0 %v2713
  %2993 = vmatprep.subr.mxu0 %v2716
  %2994 = vmatpush1.xpose.msra.mxu0 %v2715
  %2995 = vmatprep.subr.mxu0 %v2718
  %2996 = vmatpush1.xpose.msra.mxu0 %v2717
  %2997 = vmatprep.subr.mxu0 %v2720
  %2998 = vmatpush1.xpose.msra.mxu0 %v2719
  %2999 = vmatprep.subr.mxu0 %v2722
  %3000 = vmatpush1.xpose.msra.mxu0 %v2721
  %3001 = vmatprep.subr.mxu0 %v2724
  %3002 = vmatpush1.xpose.msra.mxu0 %v2723
  %3003 = vmatprep.subr.mxu0 %v2726
  %3004 = vmatpush1.xpose.msra.mxu0 %v2725
  %3005 = vmatprep.subr.mxu0 %v2728
  %3006 = vmatpush1.xpose.msra.mxu0 %v2727
  %3007 = vmatprep.subr.mxu0 %v2730
  %3008 = vmatpush1.xpose.msra.mxu0 %v2729
  %3009 = vmatprep.subr.mxu0 %v2732
  %3010 = vmatpush1.xpose.msra.mxu0 %v2731
  %3011 = vmatprep.subr.mxu0 %v2734
  %3012 = vmatpush1.xpose.msra.mxu0 %v2733
  %3013 = vmatprep.subr.mxu0 %v2736
  %3014 = vmatpush1.xpose.msra.mxu0 %v2735
  %3015 = vmatprep.subr.mxu0 %v2738
  %3016 = vmatpush1.xpose.msra.mxu0 %v2737
  %3017 = vmatprep.subr.mxu0 %v2740
  %3018 = vmatpush1.xpose.msra.mxu0 %v2739
  %3019 = vmatprep.subr.mxu0 %v2742
  %3020 = vmatpush1.xpose.msra.mxu0 %v2741
  %3021 = vmatprep.subr.mxu0 %v2744
  %3022 = vmatpush1.xpose.msra.mxu0 %v2743
  %3023 = vmatprep.mubr.f32.mxu0 %v2810
  %3024 = vmatmul.mubr.f32.gmra.mrb[0].mxu0 %v2809
  %v3025 = vpop.f32.mrb[0].mxu0
  %v3026 = vadd.f32 %v2815, %v3025
  %v3027 = vpop.f32.mrb[0].mxu0
  %v3028 = vadd.f32 %v2815, %v3027
  %3029 = vdwg.mxu0
  %3030 = vmatprep.subr.mxu0 %v2746
  %3031 = vmatpush1.xpose.msra.mxu0 %v2745
  %3032 = vmatprep.subr.mxu0 %v2748
  %3033 = vmatpush1.xpose.msra.mxu0 %v2747
  %3034 = vmatprep.subr.mxu0 %v2750
  %3035 = vmatpush1.xpose.msra.mxu0 %v2749
  %3036 = vmatprep.subr.mxu0 %v2752
  %3037 = vmatpush1.xpose.msra.mxu0 %v2751
  %3038 = vmatprep.subr.mxu0 %v2754
  %3039 = vmatpush1.xpose.msra.mxu0 %v2753
  %3040 = vmatprep.subr.mxu0 %v2756
  %3041 = vmatpush1.xpose.msra.mxu0 %v2755
  %3042 = vmatprep.subr.mxu0 %v2758
  %3043 = vmatpush1.xpose.msra.mxu0 %v2757
  %3044 = vmatprep.subr.mxu0 %v2760
  %3045 = vmatpush1.xpose.msra.mxu0 %v2759
  %3046 = vmatprep.subr.mxu0 %v2762
  %3047 = vmatpush1.xpose.msra.mxu0 %v2761
  %3048 = vmatprep.subr.mxu0 %v2764
  %3049 = vmatpush1.xpose.msra.mxu0 %v2763
  %3050 = vmatprep.subr.mxu0 %v2766
  %3051 = vmatpush1.xpose.msra.mxu0 %v2765
  %3052 = vmatprep.subr.mxu0 %v2768
  %3053 = vmatpush1.xpose.msra.mxu0 %v2767
  %3054 = vmatprep.subr.mxu0 %v2770
  %3055 = vmatpush1.xpose.msra.mxu0 %v2769
  %3056 = vmatprep.subr.mxu0 %v2772
  %3057 = vmatpush1.xpose.msra.mxu0 %v2771
  %3058 = vmatprep.subr.mxu0 %v2774
  %3059 = vmatpush1.xpose.msra.mxu0 %v2773
  %3060 = vmatprep.subr.mxu0 %v2776
  %3061 = vmatpush1.xpose.msra.mxu0 %v2775
  %3062 = vmatprep.subr.mxu0 %v2778
  %3063 = vmatpush1.xpose.msra.mxu0 %v2777
  %3064 = vmatprep.subr.mxu0 %v2780
  %3065 = vmatpush1.xpose.msra.mxu0 %v2779
  %3066 = vmatprep.subr.mxu0 %v2782
  %3067 = vmatpush1.xpose.msra.mxu0 %v2781
  %3068 = vmatprep.subr.mxu0 %v2784
  %3069 = vmatpush1.xpose.msra.mxu0 %v2783
  %3070 = vmatprep.subr.mxu0 %v2786
  %3071 = vmatpush1.xpose.msra.mxu0 %v2785
  %3072 = vmatprep.subr.mxu0 %v2788
  %3073 = vmatpush1.xpose.msra.mxu0 %v2787
  %3074 = vmatprep.subr.mxu0 %v2790
  %3075 = vmatpush1.xpose.msra.mxu0 %v2789
  %3076 = vmatprep.subr.mxu0 %v2792
  %3077 = vmatpush1.xpose.msra.mxu0 %v2791
  %3078 = vmatprep.subr.mxu0 %v2794
  %3079 = vmatpush1.xpose.msra.mxu0 %v2793
  %3080 = vmatprep.subr.mxu0 %v2796
  %3081 = vmatpush1.xpose.msra.mxu0 %v2795
  %3082 = vmatprep.subr.mxu0 %v2798
  %3083 = vmatpush1.xpose.msra.mxu0 %v2797
  %3084 = vmatprep.subr.mxu0 %v2800
  %3085 = vmatpush1.xpose.msra.mxu0 %v2799
  %3086 = vmatprep.subr.mxu0 %v2802
  %3087 = vmatpush1.xpose.msra.mxu0 %v2801
  %3088 = vmatprep.subr.mxu0 %v2804
  %3089 = vmatpush1.xpose.msra.mxu0 %v2803
  %3090 = vmatprep.subr.mxu0 %v2806
  %3091 = vmatpush1.xpose.msra.mxu0 %v2805
  %3092 = vmatprep.subr.mxu0 %v2808
  %3093 = vmatpush1.xpose.msra.mxu0 %v2807
  %3094 = vmatprep.mubr.f32.mxu0 %v2810
  %3095 = vmatmul.mubr.f32.gmra.mrb[0].mxu0 %v2809
  %v3096 = vpop.f32.mrb[0].mxu0
  %v3097 = vadd.f32 %v2815, %v3096
  %v3098 = vpop.f32.mrb[0].mxu0
  %v3099 = vadd.f32 %v2815, %v3098
  %3100 = vdwg.mxu0
  %3101 = vst [vmem:[%s7] sm:$0xff] %v2884
  %3102 = vst [vmem:[%s7 + $0x8] sm:$0xff] %v2886
  %3103 = vst [vmem:[%s7 + $0x10] sm:$0xff] %v2955
  %3104 = vst [vmem:[%s7 + $0x18] sm:$0xff] %v2957
  %3105 = vst [vmem:[%s7 + $0x20] sm:$0xff] %v3026
  %3106 = vst [vmem:[%s7 + $0x28] sm:$0xff] %v3028
  %3107 = vst [vmem:[%s7 + $0x30] sm:$0xff] %v3097
  %3108 = vst [vmem:[%s7 + $0x38] sm:$0xff] %v3099
  // Predicated region
  $region30: #{critic_forward.1} parent=0 // pred_check
    _
  $region31: #{critic_forward.1} parent=0 // pred_check_branch
    %3110 = sbr.rel (0) target = $region33
  $region32: #{critic_forward.1} parent=0 // pred_region
    _
  $region33: #{critic_forward.1} parent=0 // pred_fallthru
    _
  // Predicated region
  $region34: #{critic_forward.1} parent=0 // pred_check
    _
  $region35: #{critic_forward.1} parent=0 // pred_check_branch
    %3112 = sbr.rel (0) target = $region37
  $region36: #{critic_forward.1} parent=0 // pred_region
    _
  $region37: #{critic_forward.1} parent=0 // pred_fallthru
    _

</llo_original>
